<compile_context>
chip_gen: v7x
topology: tpu7x:2x2x1
jax: 0.10.0
libtpu: 0.0.40
codegen_flags: <defaults>
</compile_context>

<pallas_src>
from functools import lru_cache

import jax
import jax.numpy as jnp
from jax.experimental import pallas as pl
from jax.experimental.pallas import tpu as pltpu


def _round_up(x, m):
    return (x + m - 1) // m * m


def _banded_weight(w_ck, W, K, lane_stride):
    """(2, K, K) conv weight -> (2*K*lane_stride, W) banded matrix B.

    For window s = ch*K + dy (channel ch of [avg, max], shifted vertically by
    dy), row block B[s*lane_stride : s*lane_stride + W] is the banded matrix of
    kernel row (ch, dy); rows [W, lane_stride) are zero filler so the windows
    can be stacked at 128-aligned lane offsets inside the kernel.  Horizontal
    zero padding of the convolution is folded into the band structure.
    """
    pad = K // 2
    # shifts[dx][wi, w] = 1 iff wi == w + dx - pad (out-of-range wi dropped ->
    # implicit horizontal zero padding).
    shifts = jnp.stack(
        [jnp.eye(W, W, k=-(dx - pad), dtype=jnp.float32) for dx in range(K)])
    b = jnp.einsum('cyx,xiw->cyiw', w_ck.astype(jnp.float32), shifts)  # (2,K,W,W)
    b = jnp.pad(b, ((0, 0), (0, 0), (0, lane_stride - W), (0, 0)))
    return b.reshape(2 * K * lane_stride, W)


@lru_cache(maxsize=None)
def _build_spatial_attention(N, H, W, C, K):
    pad = K // 2
    top = _round_up(pad, 8)                   # sublane-aligned top padding
    hp = _round_up(top + H + pad, 8)          # rows of the padded stat maps
    ls = _round_up(W, 128)                    # 128-aligned lane stride / window
    a_cols = 2 * K * ls

    def kernel(x_ref, b_ref, o_ref, pad_ref, a_ref):
        # x_ref  : (H, W, C)     NHWC features of one batch element
        # b_ref  : (2*K*ls, W)   banded conv weights (host precomputed)
        # o_ref  : (H, W)        sigmoid(conv7x7([avg, max]))
        # pad_ref: (2, hp, W)    vertically zero-padded [avg, max] maps
        # a_ref  : (H, 2*K*ls)   lane-stacked shifted windows
        x = x_ref[...]

        # Channel statistics fused into the kernel: one HBM pass over x.
        pad_ref[...] = jnp.zeros_like(pad_ref)
        pad_ref[0, top:top + H, :] = jnp.mean(x, axis=-1)
        pad_ref[1, top:top + H, :] = jnp.max(x, axis=-1)

        # Stack the 2*K vertically shifted windows side by side along lanes.
        # Loads are sublane-offset only, stores land at 128-aligned lane
        # offsets, so no cross-lane relayout is needed anywhere.
        a_ref[...] = jnp.zeros_like(a_ref)
        for ch in range(2):
            for dy in range(K):
                s = ch * K + dy
                r0 = top - pad + dy
                a_ref[:, s * ls:s * ls + W] = pad_ref[ch, r0:r0 + H, :]

        # The whole 7x7 x 2-channel convolution as a single MXU matmul.
        y = jnp.dot(a_ref[...], b_ref[...], preferred_element_type=jnp.float32)
        o_ref[...] = jax.nn.sigmoid(y)

    return pl.pallas_call(
        kernel,
        out_shape=jax.ShapeDtypeStruct((N, H, W), jnp.float32),
        grid=(N,),
        in_specs=[
            pl.BlockSpec((None, H, W, C), lambda n: (n, 0, 0, 0)),
            pl.BlockSpec((a_cols, W), lambda n: (0, 0)),
        ],
        out_specs=pl.BlockSpec((None, H, W), lambda n: (n, 0, 0)),
        scratch_shapes=[
            pltpu.VMEM((2, hp, W), jnp.float32),
            pltpu.VMEM((H, a_cols), jnp.float32),
        ],
        compiler_params=pltpu.CompilerParams(
            dimension_semantics=("parallel",)),
    )


@jax.jit
def spatial_attention(x_nchw, conv_weight):
    """SpatialAttention.forward.

    x_nchw:      (N, C, H, W) float32
    conv_weight: (1, 2, K, K) float32   (nn.Conv2d(2, 1, K, bias=False).weight)
    returns      (N, 1, H, W) float32
    """
    N, C, H, W = x_nchw.shape
    K = conv_weight.shape[-1]
    # NCHW -> NHWC so channels sit on the TPU lane axis inside the kernel.
    # (In a full NHWC model this layout adapter disappears.)
    x_nhwc = jnp.transpose(x_nchw, (0, 2, 3, 1))
    b = _banded_weight(conv_weight.reshape(2, K, K), W, K, _round_up(W, 128))
    y = _build_spatial_attention(N, H, W, C, K)(x_nhwc, b)        # (N, H, W)
    return y[:, None, :, :]


def _reference(x_nchw, conv_weight):
    """Pure-JAX reference matching the PyTorch module."""
    avg = jnp.mean(x_nchw, axis=1, keepdims=True)
    mx = jnp.max(x_nchw, axis=1, keepdims=True)
    y = jnp.concatenate([avg, mx], axis=1)
    y = jax.lax.conv_general_dilated(
        y, conv_weight, window_strides=(1, 1), padding='SAME',
        dimension_numbers=('NCHW', 'OIHW', 'NCHW'),
        precision=jax.lax.Precision.HIGHEST)
    return jax.nn.sigmoid(y)


if __name__ == "__main__":
    key = jax.random.PRNGKey(0)
    k_x, k_w = jax.random.split(key)

    N, C, H, W, K = 2, 64, 16, 16, 7
    x = jax.random.uniform(k_x, (N, C, H, W), dtype=jnp.float32)
    w = jax.random.normal(k_w, (1, 2, K, K), dtype=jnp.float32) \
        * (2.0 / (2 * K * K)) ** 0.5

    out = jax.block_until_ready(spatial_attention(x, w))

    assert out.shape == (N, 1, H, W), out.shape
    assert out.dtype == jnp.float32
    assert bool(jnp.all(jnp.isfinite(out)))

    ref = _reference(x, w)
    err = float(jnp.max(jnp.abs(out - ref)))
    assert err < 5e-3, f"max abs err vs reference: {err}"

    print("KERNEL_OK")
</pallas_src>

<mosaic_0001>
module attributes {stable_mosaic.version = 11 : i64} {
  func.func @kernel(%arg0: i32, %arg1: memref<1x16x16x64xf32, #tpu.memory_space<vmem>>, %arg2: memref<1792x16xf32, #tpu.memory_space<vmem>>, %arg3: memref<1x16x16xf32, #tpu.memory_space<vmem>>, %arg4: memref<2x32x16xf32, #tpu.memory_space<vmem>>, %arg5: memref<16x1792xf32, #tpu.memory_space<vmem>>) attributes {dimension_semantics = [#tpu.dimension_semantics<parallel>], iteration_bounds = array<i64: 2>, scalar_prefetch = 0 : i64, scratch_operands = 2 : i64, tpu.core_type = #tpu.core_type<tc>, window_params = [{transform_indices = @transform_0, window_bounds = array<i64: 1, 16, 16, 64>}, {pipeline_mode = #tpu.pipeline_mode<synchronous>, transform_indices = @transform_1, window_bounds = array<i64: 1792, 16>}, {transform_indices = @transform_2, window_bounds = array<i64: 1, 16, 16>}]} {
    %c0 = arith.constant 0 : index
    %c0_0 = arith.constant 0 : index
    %c0_1 = arith.constant 0 : index
    %c0_2 = arith.constant 0 : index
    %0 = vector.load %arg1[%c0, %c0_0, %c0_1, %c0_2] : memref<1x16x16x64xf32, #tpu.memory_space<vmem>>, vector<1x16x16x64xf32>
    %1 = vector.shape_cast %0 : vector<1x16x16x64xf32> to vector<16x16x64xf32>
    %cst = arith.constant 0.000000e+00 : f32
    %2 = vector.broadcast %cst : f32 to vector<2x32x16xf32>
    %c0_3 = arith.constant 0 : index
    %c0_4 = arith.constant 0 : index
    %c0_5 = arith.constant 0 : index
    %3 = vector.load %arg4[%c0_3, %c0_4, %c0_5] : memref<2x32x16xf32, #tpu.memory_space<vmem>>, vector<2x32x16xf32>
    tpu.vector_store %arg4[%c0_3, %c0_4, %c0_5], %2 {strides = array<i32>} : memref<2x32x16xf32, #tpu.memory_space<vmem>>, vector<2x32x16xf32>,
    %cst_6 = arith.constant dense<0.000000e+00> : vector<16x16xf32>
    %4 = vector.multi_reduction <add>, %1, %cst_6 [2] : vector<16x16x64xf32> to vector<16x16xf32>
    %cst_7 = arith.constant 6.400000e+01 : f32
    %5 = vector.broadcast %cst_7 : f32 to vector<16x16xf32>
    %6 = arith.divf %4, %5 : vector<16x16xf32>
    %c0_8 = arith.constant 0 : index
    %c8 = arith.constant 8 : index
    %c0_9 = arith.constant 0 : index
    %7 = vector.load %arg4[%c0_8, %c8, %c0_9] : memref<2x32x16xf32, #tpu.memory_space<vmem>>, vector<1x16x16xf32>
    %8 = vector.shape_cast %7 : vector<1x16x16xf32> to vector<16x16xf32>
    %9 = vector.shape_cast %6 : vector<16x16xf32> to vector<1x16x16xf32>
    tpu.vector_store %arg4[%c0_8, %c8, %c0_9], %9 {strides = array<i32>} : memref<2x32x16xf32, #tpu.memory_space<vmem>>, vector<1x16x16xf32>,
    %cst_10 = arith.constant dense<0xFF800000> : vector<16x16xf32>
    %10 = vector.multi_reduction <maximumf>, %1, %cst_10 [2] : vector<16x16x64xf32> to vector<16x16xf32>
    %c1 = arith.constant 1 : index
    %c8_11 = arith.constant 8 : index
    %c0_12 = arith.constant 0 : index
    %11 = vector.load %arg4[%c1, %c8_11, %c0_12] : memref<2x32x16xf32, #tpu.memory_space<vmem>>, vector<1x16x16xf32>
    %12 = vector.shape_cast %11 : vector<1x16x16xf32> to vector<16x16xf32>
    %13 = vector.shape_cast %10 : vector<16x16xf32> to vector<1x16x16xf32>
    tpu.vector_store %arg4[%c1, %c8_11, %c0_12], %13 {strides = array<i32>} : memref<2x32x16xf32, #tpu.memory_space<vmem>>, vector<1x16x16xf32>,
    %cst_13 = arith.constant 0.000000e+00 : f32
    %14 = vector.broadcast %cst_13 : f32 to vector<16x1792xf32>
    %c0_14 = arith.constant 0 : index
    %c0_15 = arith.constant 0 : index
    %15 = vector.load %arg5[%c0_14, %c0_15] : memref<16x1792xf32, #tpu.memory_space<vmem>>, vector<16x1792xf32>
    tpu.vector_store %arg5[%c0_14, %c0_15], %14 {strides = array<i32>} : memref<16x1792xf32, #tpu.memory_space<vmem>>, vector<16x1792xf32>,
    %c0_16 = arith.constant 0 : index
    %c5 = arith.constant 5 : index
    %c0_17 = arith.constant 0 : index
    %16 = vector.load %arg4[%c0_16, %c5, %c0_17] : memref<2x32x16xf32, #tpu.memory_space<vmem>>, vector<1x16x16xf32>
    %17 = vector.shape_cast %16 : vector<1x16x16xf32> to vector<16x16xf32>
    %c0_18 = arith.constant 0 : index
    %c0_19 = arith.constant 0 : index
    %18 = vector.load %arg5[%c0_18, %c0_19] : memref<16x1792xf32, #tpu.memory_space<vmem>>, vector<16x16xf32>
    tpu.vector_store %arg5[%c0_18, %c0_19], %17 {strides = array<i32>} : memref<16x1792xf32, #tpu.memory_space<vmem>>, vector<16x16xf32>,
    %c0_20 = arith.constant 0 : index
    %c6 = arith.constant 6 : index
    %c0_21 = arith.constant 0 : index
    %19 = vector.load %arg4[%c0_20, %c6, %c0_21] : memref<2x32x16xf32, #tpu.memory_space<vmem>>, vector<1x16x16xf32>
    %20 = vector.shape_cast %19 : vector<1x16x16xf32> to vector<16x16xf32>
    %c0_22 = arith.constant 0 : index
    %c128 = arith.constant 128 : index
    %21 = vector.load %arg5[%c0_22, %c128] : memref<16x1792xf32, #tpu.memory_space<vmem>>, vector<16x16xf32>
    tpu.vector_store %arg5[%c0_22, %c128], %20 {strides = array<i32>} : memref<16x1792xf32, #tpu.memory_space<vmem>>, vector<16x16xf32>,
    %c0_23 = arith.constant 0 : index
    %c7 = arith.constant 7 : index
    %c0_24 = arith.constant 0 : index
    %22 = vector.load %arg4[%c0_23, %c7, %c0_24] : memref<2x32x16xf32, #tpu.memory_space<vmem>>, vector<1x16x16xf32>
    %23 = vector.shape_cast %22 : vector<1x16x16xf32> to vector<16x16xf32>
    %c0_25 = arith.constant 0 : index
    %c256 = arith.constant 256 : index
    %24 = vector.load %arg5[%c0_25, %c256] : memref<16x1792xf32, #tpu.memory_space<vmem>>, vector<16x16xf32>
    tpu.vector_store %arg5[%c0_25, %c256], %23 {strides = array<i32>} : memref<16x1792xf32, #tpu.memory_space<vmem>>, vector<16x16xf32>,
    %c0_26 = arith.constant 0 : index
    %c8_27 = arith.constant 8 : index
    %c0_28 = arith.constant 0 : index
    %25 = vector.load %arg4[%c0_26, %c8_27, %c0_28] : memref<2x32x16xf32, #tpu.memory_space<vmem>>, vector<1x16x16xf32>
    %26 = vector.shape_cast %25 : vector<1x16x16xf32> to vector<16x16xf32>
    %c0_29 = arith.constant 0 : index
    %c384 = arith.constant 384 : index
    %27 = vector.load %arg5[%c0_29, %c384] : memref<16x1792xf32, #tpu.memory_space<vmem>>, vector<16x16xf32>
    tpu.vector_store %arg5[%c0_29, %c384], %26 {strides = array<i32>} : memref<16x1792xf32, #tpu.memory_space<vmem>>, vector<16x16xf32>,
    %c0_30 = arith.constant 0 : index
    %c9 = arith.constant 9 : index
    %c0_31 = arith.constant 0 : index
    %28 = vector.load %arg4[%c0_30, %c9, %c0_31] : memref<2x32x16xf32, #tpu.memory_space<vmem>>, vector<1x16x16xf32>
    %29 = vector.shape_cast %28 : vector<1x16x16xf32> to vector<16x16xf32>
    %c0_32 = arith.constant 0 : index
    %c512 = arith.constant 512 : index
    %30 = vector.load %arg5[%c0_32, %c512] : memref<16x1792xf32, #tpu.memory_space<vmem>>, vector<16x16xf32>
    tpu.vector_store %arg5[%c0_32, %c512], %29 {strides = array<i32>} : memref<16x1792xf32, #tpu.memory_space<vmem>>, vector<16x16xf32>,
    %c0_33 = arith.constant 0 : index
    %c10 = arith.constant 10 : index
    %c0_34 = arith.constant 0 : index
    %31 = vector.load %arg4[%c0_33, %c10, %c0_34] : memref<2x32x16xf32, #tpu.memory_space<vmem>>, vector<1x16x16xf32>
    %32 = vector.shape_cast %31 : vector<1x16x16xf32> to vector<16x16xf32>
    %c0_35 = arith.constant 0 : index
    %c640 = arith.constant 640 : index
    %33 = vector.load %arg5[%c0_35, %c640] : memref<16x1792xf32, #tpu.memory_space<vmem>>, vector<16x16xf32>
    tpu.vector_store %arg5[%c0_35, %c640], %32 {strides = array<i32>} : memref<16x1792xf32, #tpu.memory_space<vmem>>, vector<16x16xf32>,
    %c0_36 = arith.constant 0 : index
    %c11 = arith.constant 11 : index
    %c0_37 = arith.constant 0 : index
    %34 = vector.load %arg4[%c0_36, %c11, %c0_37] : memref<2x32x16xf32, #tpu.memory_space<vmem>>, vector<1x16x16xf32>
    %35 = vector.shape_cast %34 : vector<1x16x16xf32> to vector<16x16xf32>
    %c0_38 = arith.constant 0 : index
    %c768 = arith.constant 768 : index
    %36 = vector.load %arg5[%c0_38, %c768] : memref<16x1792xf32, #tpu.memory_space<vmem>>, vector<16x16xf32>
    tpu.vector_store %arg5[%c0_38, %c768], %35 {strides = array<i32>} : memref<16x1792xf32, #tpu.memory_space<vmem>>, vector<16x16xf32>,
    %c1_39 = arith.constant 1 : index
    %c5_40 = arith.constant 5 : index
    %c0_41 = arith.constant 0 : index
    %37 = vector.load %arg4[%c1_39, %c5_40, %c0_41] : memref<2x32x16xf32, #tpu.memory_space<vmem>>, vector<1x16x16xf32>
    %38 = vector.shape_cast %37 : vector<1x16x16xf32> to vector<16x16xf32>
    %c0_42 = arith.constant 0 : index
    %c896 = arith.constant 896 : index
    %39 = vector.load %arg5[%c0_42, %c896] : memref<16x1792xf32, #tpu.memory_space<vmem>>, vector<16x16xf32>
    tpu.vector_store %arg5[%c0_42, %c896], %38 {strides = array<i32>} : memref<16x1792xf32, #tpu.memory_space<vmem>>, vector<16x16xf32>,
    %c1_43 = arith.constant 1 : index
    %c6_44 = arith.constant 6 : index
    %c0_45 = arith.constant 0 : index
    %40 = vector.load %arg4[%c1_43, %c6_44, %c0_45] : memref<2x32x16xf32, #tpu.memory_space<vmem>>, vector<1x16x16xf32>
    %41 = vector.shape_cast %40 : vector<1x16x16xf32> to vector<16x16xf32>
    %c0_46 = arith.constant 0 : index
    %c1024 = arith.constant 1024 : index
    %42 = vector.load %arg5[%c0_46, %c1024] : memref<16x1792xf32, #tpu.memory_space<vmem>>, vector<16x16xf32>
    tpu.vector_store %arg5[%c0_46, %c1024], %41 {strides = array<i32>} : memref<16x1792xf32, #tpu.memory_space<vmem>>, vector<16x16xf32>,
    %c1_47 = arith.constant 1 : index
    %c7_48 = arith.constant 7 : index
    %c0_49 = arith.constant 0 : index
    %43 = vector.load %arg4[%c1_47, %c7_48, %c0_49] : memref<2x32x16xf32, #tpu.memory_space<vmem>>, vector<1x16x16xf32>
    %44 = vector.shape_cast %43 : vector<1x16x16xf32> to vector<16x16xf32>
    %c0_50 = arith.constant 0 : index
    %c1152 = arith.constant 1152 : index
    %45 = vector.load %arg5[%c0_50, %c1152] : memref<16x1792xf32, #tpu.memory_space<vmem>>, vector<16x16xf32>
    tpu.vector_store %arg5[%c0_50, %c1152], %44 {strides = array<i32>} : memref<16x1792xf32, #tpu.memory_space<vmem>>, vector<16x16xf32>,
    %c1_51 = arith.constant 1 : index
    %c8_52 = arith.constant 8 : index
    %c0_53 = arith.constant 0 : index
    %46 = vector.load %arg4[%c1_51, %c8_52, %c0_53] : memref<2x32x16xf32, #tpu.memory_space<vmem>>, vector<1x16x16xf32>
    %47 = vector.shape_cast %46 : vector<1x16x16xf32> to vector<16x16xf32>
    %c0_54 = arith.constant 0 : index
    %c1280 = arith.constant 1280 : index
    %48 = vector.load %arg5[%c0_54, %c1280] : memref<16x1792xf32, #tpu.memory_space<vmem>>, vector<16x16xf32>
    tpu.vector_store %arg5[%c0_54, %c1280], %47 {strides = array<i32>} : memref<16x1792xf32, #tpu.memory_space<vmem>>, vector<16x16xf32>,
    %c1_55 = arith.constant 1 : index
    %c9_56 = arith.constant 9 : index
    %c0_57 = arith.constant 0 : index
    %49 = vector.load %arg4[%c1_55, %c9_56, %c0_57] : memref<2x32x16xf32, #tpu.memory_space<vmem>>, vector<1x16x16xf32>
    %50 = vector.shape_cast %49 : vector<1x16x16xf32> to vector<16x16xf32>
    %c0_58 = arith.constant 0 : index
    %c1408 = arith.constant 1408 : index
    %51 = vector.load %arg5[%c0_58, %c1408] : memref<16x1792xf32, #tpu.memory_space<vmem>>, vector<16x16xf32>
    tpu.vector_store %arg5[%c0_58, %c1408], %50 {strides = array<i32>} : memref<16x1792xf32, #tpu.memory_space<vmem>>, vector<16x16xf32>,
    %c1_59 = arith.constant 1 : index
    %c10_60 = arith.constant 10 : index
    %c0_61 = arith.constant 0 : index
    %52 = vector.load %arg4[%c1_59, %c10_60, %c0_61] : memref<2x32x16xf32, #tpu.memory_space<vmem>>, vector<1x16x16xf32>
    %53 = vector.shape_cast %52 : vector<1x16x16xf32> to vector<16x16xf32>
    %c0_62 = arith.constant 0 : index
    %c1536 = arith.constant 1536 : index
    %54 = vector.load %arg5[%c0_62, %c1536] : memref<16x1792xf32, #tpu.memory_space<vmem>>, vector<16x16xf32>
    tpu.vector_store %arg5[%c0_62, %c1536], %53 {strides = array<i32>} : memref<16x1792xf32, #tpu.memory_space<vmem>>, vector<16x16xf32>,
    %c1_63 = arith.constant 1 : index
    %c11_64 = arith.constant 11 : index
    %c0_65 = arith.constant 0 : index
    %55 = vector.load %arg4[%c1_63, %c11_64, %c0_65] : memref<2x32x16xf32, #tpu.memory_space<vmem>>, vector<1x16x16xf32>
    %56 = vector.shape_cast %55 : vector<1x16x16xf32> to vector<16x16xf32>
    %c0_66 = arith.constant 0 : index
    %c1664 = arith.constant 1664 : index
    %57 = vector.load %arg5[%c0_66, %c1664] : memref<16x1792xf32, #tpu.memory_space<vmem>>, vector<16x16xf32>
    tpu.vector_store %arg5[%c0_66, %c1664], %56 {strides = array<i32>} : memref<16x1792xf32, #tpu.memory_space<vmem>>, vector<16x16xf32>,
    %c0_67 = arith.constant 0 : index
    %c0_68 = arith.constant 0 : index
    %58 = vector.load %arg5[%c0_67, %c0_68] : memref<16x1792xf32, #tpu.memory_space<vmem>>, vector<16x1792xf32>
    %c0_69 = arith.constant 0 : index
    %c0_70 = arith.constant 0 : index
    %59 = vector.load %arg2[%c0_69, %c0_70] : memref<1792x16xf32, #tpu.memory_space<vmem>>, vector<1792x16xf32>
    %cst_71 = arith.constant dense<0.000000e+00> : vector<16x16xf32>
    %60 = tpu.matmul %58, %59, %cst_71 {dimension_numbers = #tpu.dot_dimension_numbers<[1], [0], [0], [1], [0, 0, 1, 1], [], []>} : vector<16x1792xf32>, vector<1792x16xf32>, vector<16x16xf32> -> vector<16x16xf32>
    %61 = arith.negf %60 : vector<16x16xf32>
    %62 = math.exp %61 : vector<16x16xf32>
    %cst_72 = arith.constant 1.000000e+00 : f32
    %63 = vector.broadcast %cst_72 : f32 to vector<16x16xf32>
    %64 = arith.addf %63, %62 : vector<16x16xf32>
    %65 = arith.divf %63, %64 : vector<16x16xf32>
    %c0_73 = arith.constant 0 : index
    %c0_74 = arith.constant 0 : index
    %c0_75 = arith.constant 0 : index
    %66 = vector.load %arg3[%c0_73, %c0_74, %c0_75] : memref<1x16x16xf32, #tpu.memory_space<vmem>>, vector<1x16x16xf32>
    %67 = vector.shape_cast %66 : vector<1x16x16xf32> to vector<16x16xf32>
    %68 = vector.shape_cast %65 : vector<16x16xf32> to vector<1x16x16xf32>
    tpu.vector_store %arg3[%c0_73, %c0_74, %c0_75], %68 {strides = array<i32>} : memref<1x16x16xf32, #tpu.memory_space<vmem>>, vector<1x16x16xf32>,
    return
  }
  func.func @transform_0(%arg0: i32) -> (i32, i32, i32, i32) {
    %c0_i32 = arith.constant 0 : i32
    %c0_i32_0 = arith.constant 0 : i32
    %c0_i32_1 = arith.constant 0 : i32
    %c0_i32_2 = arith.constant 0 : i32
    return %arg0, %c0_i32, %c0_i32_0, %c0_i32_1 : i32, i32, i32, i32
  }
  func.func @transform_1(%arg0: i32) -> (i32, i32) {
    %c0_i32 = arith.constant 0 : i32
    %c0_i32_0 = arith.constant 0 : i32
    %c0_i32_1 = arith.constant 0 : i32
    return %c0_i32, %c0_i32_0 : i32, i32
  }
  func.func @transform_2(%arg0: i32) -> (i32, i32, i32) {
    %c0_i32 = arith.constant 0 : i32
    %c0_i32_0 = arith.constant 0 : i32
    %c0_i32_1 = arith.constant 0 : i32
    return %arg0, %c0_i32, %c0_i32_0 : i32, i32, i32
  }
}

</mosaic_0001>

<llo_original>
// kernel: spatial_attention.1
$region0: #{spatial_attention.1}
  #allocation0 [shape = 'u32[]', space=smem, size = 0x4, offset = 0x4, fixed_abs, tag = 'smem constant byte address 0x4 - core index']
  #allocation1 [shape = 'u32[144,128]{1,0:T(1,128)}', space=vmem, size = 0x12000, scoped, tag = 'internal scratch']
  #allocation2 [shape = 'f32[2,32,16]{2,1,0:T(8,128)}', space=vmem, size = 0x8000, scoped, tag = 'scratch operand']
  #allocation3 [shape = 'f32[16,1792]{1,0:T(8,128)}', space=vmem, size = 0x1c000, scoped, tag = 'scratch operand']
  %s0 = inlined_call_operand.vmem [shape: f32[2,16,16,64], index: 0, kind: input, shape index: {}]
  %s1 = inlined_call_operand.vmem [shape: f32[1792,16], index: 1, kind: input, shape index: {}]
  %s2 = inlined_call_operand.hbm [shape: f32[2,16,16], index: 2, kind: output, shape index: {}]
  %s3 = sld [smem:[#allocation0]]
  $region41: #{spatial_attention.1} parent=0
    _
  %s5 = ssub.s32 1, %s3
  %s6 = scalar_select 0, %s5, %s3
  $region1: #{spatial_attention.1} parent=0
    #allocation4 [shape = 'u8[16384]{0}', space=vmem, size = 0x4000, scoped, tag = 'output window, operand 0']
    #allocation5 [shape = 's32[2]{0}', space=sflag, size = 0x8, scoped, tag = 'scoped memory for spatial_attention.1']
    %7 = vsyncpa [#allocation5], 0
    %s8 = scalar_lea.sflag [#allocation5], 1
    %9 = vsyncpa %s8, 0
    loop: start=0, step=1, limit=4
    $region2: #{spatial_attention.1} parent=1 // loop_pre_header
      _
    $region3: #{spatial_attention.1} parent=1 // loop_header
      %s11 = sphi 0, %s15
      %p12 = scmp.ge.s32.totalorder %s11, 4
      %s21 = sphi 0, %s23
      %s24 = sphi 0, %s21
      %s25 = sphi 0, %s24
      %s41 = sphi 0, %s25
      %s45 = sphi 0, %s45
      %s47 = sphi 0, %s45
      %s48 = sphi 0, %s47
      %s62 = sphi 0, %s48
      %s68 = sphi 0, %s70
      %s71 = sphi 0, %s68
      %s72 = sphi 0, %s71
      %s88 = sphi 0, %s72
    $region4: #{spatial_attention.1} parent=1 // loop_header_branch
      %14 = sbr.rel (%p12) target = $region8
    $region5: #{spatial_attention.1} parent=1 // loop_body
      %s16 = ssub.s32 %s11, 1
      %s17 = ssub.s32 %s11, 2
      %s18 = sadd.s32 %s11, 1
      %s19 = ssub.s32 %s11, %s18
      %p20 = scmp.eq.s32.totalorder %s19, 0
      %s22 = sadd.s32 %s21, 1
      %s23 = scalar_select %p20, %s21, %s22
      %p26 = pneg %p20
      %p27 = scmp.eq.s32.totalorder %s11, 1
      %p28 = por %p26, %p27
      %p29 = scmp.ne.s32.totalorder %s21, %s24
      %p30 = scmp.eq.s32.totalorder %s11, 0
      %p31 = por %p29, %p30
      %p32 = scmp.ne.s32.totalorder %s21, %s24
      %p33 = scmp.eq.s32.totalorder %s16, 1
      %p34 = por %p32, %p33
      %p35 = scmp.ne.s32.totalorder %s24, %s25
      %p36 = scmp.eq.s32.totalorder %s16, 0
      %p37 = por %p35, %p36
      %p38 = scmp.ne.s32.totalorder %s24, %s25
      %p39 = scmp.eq.s32.totalorder %s17, 1
      %p40 = por %p38, %p39
      %p42 = scmp.ne.s32.totalorder %s25, %s41
      %p43 = scmp.eq.s32.totalorder %s17, 0
      %p44 = por %p42, %p43
      %s46 = sadd.s32 %s45, 1
      %p49 = scmp.eq.s32.totalorder %s11, 1
      %p50 = scmp.ne.s32.totalorder %s45, %s47
      %p51 = scmp.eq.s32.totalorder %s11, 0
      %p52 = por %p50, %p51
      %p53 = scmp.ne.s32.totalorder %s45, %s47
      %p54 = scmp.eq.s32.totalorder %s16, 1
      %p55 = por %p53, %p54
      %p56 = scmp.ne.s32.totalorder %s47, %s48
      %p57 = scmp.eq.s32.totalorder %s16, 0
      %p58 = por %p56, %p57
      %p59 = scmp.ne.s32.totalorder %s47, %s48
      %p60 = scmp.eq.s32.totalorder %s17, 1
      %p61 = por %p59, %p60
      %p63 = scmp.ne.s32.totalorder %s48, %s62
      %p64 = scmp.eq.s32.totalorder %s17, 0
      %p65 = por %p63, %p64
      %s66 = ssub.s32 %s11, %s18
      %p67 = scmp.eq.s32.totalorder %s66, 0
      %s69 = sadd.s32 %s68, 1
      %s70 = scalar_select %p67, %s68, %s69
      %p73 = pneg %p67
      %p74 = scmp.eq.s32.totalorder %s11, 1
      %p75 = por %p73, %p74
      %p76 = scmp.ne.s32.totalorder %s68, %s71
      %p77 = scmp.eq.s32.totalorder %s11, 0
      %p78 = por %p76, %p77
      %p79 = scmp.ne.s32.totalorder %s68, %s71
      %p80 = scmp.eq.s32.totalorder %s16, 1
      %p81 = por %p79, %p80
      %p82 = scmp.ne.s32.totalorder %s71, %s72
      %p83 = scmp.eq.s32.totalorder %s16, 0
      %p84 = por %p82, %p83
      %p85 = scmp.ne.s32.totalorder %s71, %s72
      %p86 = scmp.eq.s32.totalorder %s17, 1
      %p87 = por %p85, %p86
      %p89 = scmp.ne.s32.totalorder %s72, %s88
      %p90 = scmp.eq.s32.totalorder %s17, 0
      %p91 = por %p89, %p90
      %p92 = scmp.le.s32.totalorder 1, %s11
      %p93 = scmp.lt.s32.totalorder %s11, 3
      %p94 = pnand %p92, %p93
      %p95 = pneg %p94
      // Predicated region
      $region9: #{spatial_attention.1} parent=5 // pred_check
        _
      $region10: #{spatial_attention.1} parent=5 // pred_check_branch
        %97 = sbr.rel (%p94) target = $region12
      $region11: #{spatial_attention.1} parent=5 // pred_region
        %s98 = ssub.s32 %s11, 1
        // Predicated region
        $region13: #{spatial_attention.1} parent=11 // pred_check
          %p99 = pneg %p58
        $region14: #{spatial_attention.1} parent=11 // pred_check_branch
          %101 = sbr.rel (%p99) target = $region16
        $region15: #{spatial_attention.1} parent=11 // pred_region
          _
        $region16: #{spatial_attention.1} parent=11 // pred_fallthru
          _
      $region12: #{spatial_attention.1} parent=5 // pred_fallthru
        _
      %p102 = scmp.lt.s32.totalorder %s11, 2
      // Predicated region
      $region17: #{spatial_attention.1} parent=5 // pred_check
        %p103 = pneg %p102
      $region18: #{spatial_attention.1} parent=5 // pred_check_branch
        %105 = sbr.rel (%p103) target = $region20
      $region19: #{spatial_attention.1} parent=5 // pred_region
        // Predicated region
        $region21: #{spatial_attention.1} parent=19 // pred_check
          %p106 = pneg %p31
        $region22: #{spatial_attention.1} parent=19 // pred_check_branch
          %108 = sbr.rel (%p106) target = $region24
        $region23: #{spatial_attention.1} parent=19 // pred_region
          %p109 = scmp.lt.s32.totalorder %s11, 1
          %s110 = scalar_select %p109, %s11, 1
          %s111 = smul.addr %s110, 32
          %s112 = smul.addr %s111, 8
          %s113 = scalar_lea.vmem %s0, %s112
        $region24: #{spatial_attention.1} parent=19 // pred_fallthru
          _
      $region20: #{spatial_attention.1} parent=5 // pred_fallthru
        _
      %p114 = scmp.le.s32.totalorder 1, %s11
      %p115 = scmp.lt.s32.totalorder %s11, 3
      %p116 = pnand %p114, %p115
      %p117 = pneg %p116
      // Predicated region
      $region25: #{spatial_attention.1} parent=5 // pred_check
        _
      $region26: #{spatial_attention.1} parent=5 // pred_check_branch
        %119 = sbr.rel (%p116) target = $region28
      $region27: #{spatial_attention.1} parent=5 // pred_region
        %s120 = ssub.s32 %s11, 1
        %p121 = scmp.lt.s32.totalorder %s16, 1
        %s122 = scalar_select %p121, %s16, 1
        %s123 = smul.addr %s122, 32
        %s124 = smul.addr %s123, 8
        %s125 = scalar_lea.vmem %s0, %s124
        %p126 = pneg %p37
        %p127 = pneg %p34
        %p128 = pneg %p58
        %p129 = pneg %p55
        %p130 = pneg %p84
        %p131 = pneg %p81
        %s132 = sand.u32 %s71, 1
        %s133 = scalar_lea.sflag [#allocation5], %s132
        %s134 = sand.u32 %s71, 1
        %s135 = smul.addr %s134, 16
        %s136 = scalar_lea.vmem [#allocation4], %s135
        %p137 = scmp.lt.s32.totalorder %s16, 1
        %s138 = scalar_select %p137, %s16, 1
        %s139 = smul.addr %s138, 32
        %s140 = smul.addr %s139, 8
        %s141 = scalar_lea.vmem %s0, %s140
        %v142 = vld [vmem:[%s141] sm:$0xff]
        %v143 = vld [vmem:[%s141 + $0x8] sm:$0xff]
        %v144 = vld [vmem:[%s141 + $0x10] sm:$0xff]
        %v145 = vld [vmem:[%s141 + $0x18] sm:$0xff]
        %v146 = vld [vmem:[%s141 + $0x20] sm:$0xff]
        %v147 = vld [vmem:[%s141 + $0x28] sm:$0xff]
        %v148 = vld [vmem:[%s141 + $0x30] sm:$0xff]
        %v149 = vld [vmem:[%s141 + $0x38] sm:$0xff]
        %v150 = vld [vmem:[%s141 + $0x40] sm:$0xff]
        %v151 = vld [vmem:[%s141 + $0x48] sm:$0xff]
        %v152 = vld [vmem:[%s141 + $0x50] sm:$0xff]
        %v153 = vld [vmem:[%s141 + $0x58] sm:$0xff]
        %v154 = vld [vmem:[%s141 + $0x60] sm:$0xff]
        %v155 = vld [vmem:[%s141 + $0x68] sm:$0xff]
        %v156 = vld [vmem:[%s141 + $0x70] sm:$0xff]
        %v157 = vld [vmem:[%s141 + $0x78] sm:$0xff]
        %v158 = vld [vmem:[%s141 + $0x80] sm:$0xff]
        %v159 = vld [vmem:[%s141 + $0x88] sm:$0xff]
        %v160 = vld [vmem:[%s141 + $0x90] sm:$0xff]
        %v161 = vld [vmem:[%s141 + $0x98] sm:$0xff]
        %v162 = vld [vmem:[%s141 + $0xa0] sm:$0xff]
        %v163 = vld [vmem:[%s141 + $0xa8] sm:$0xff]
        %v164 = vld [vmem:[%s141 + $0xb0] sm:$0xff]
        %v165 = vld [vmem:[%s141 + $0xb8] sm:$0xff]
        %v166 = vld [vmem:[%s141 + $0xc0] sm:$0xff]
        %v167 = vld [vmem:[%s141 + $0xc8] sm:$0xff]
        %v168 = vld [vmem:[%s141 + $0xd0] sm:$0xff]
        %v169 = vld [vmem:[%s141 + $0xd8] sm:$0xff]
        %v170 = vld [vmem:[%s141 + $0xe0] sm:$0xff]
        %v171 = vld [vmem:[%s141 + $0xe8] sm:$0xff]
        %v172 = vld [vmem:[%s141 + $0xf0] sm:$0xff]
        %v173 = vld [vmem:[%s141 + $0xf8] sm:$0xff]
        %vm174 = vcmask 130048
        %175 = vst.msk [vmem:[#allocation2] sm:$0xff] %vm174, 0.0
        %176 = vst.msk [vmem:[#allocation2 + $0x8] sm:$0xff] %vm174, 0.0
        %177 = vst.msk [vmem:[#allocation2 + $0x10] sm:$0xff] %vm174, 0.0
        %178 = vst.msk [vmem:[#allocation2 + $0x18] sm:$0xff] %vm174, 0.0
        %179 = vst.msk [vmem:[#allocation2 + $0x20] sm:$0xff] %vm174, 0.0
        %180 = vst.msk [vmem:[#allocation2 + $0x28] sm:$0xff] %vm174, 0.0
        %181 = vst.msk [vmem:[#allocation2 + $0x30] sm:$0xff] %vm174, 0.0
        %182 = vst.msk [vmem:[#allocation2 + $0x38] sm:$0xff] %vm174, 0.0
        %vm183 = vcmask 523264
        %v184 = vsel %vm183, %v142, 0.0
        %185 = vadd.xlane.f32.xlu0 %v184
        %v186 = vpop.xlane.xlu0 %185
        %v187 = vsel %vm183, %v143, 0.0
        %188 = vadd.xlane.f32.xlu0 %v187
        %v189 = vpop.xlane.xlu0 %188
        %v190 = vsel %vm183, %v144, 0.0
        %191 = vadd.xlane.f32.xlu0 %v190
        %v192 = vpop.xlane.xlu0 %191
        %v193 = vsel %vm183, %v145, 0.0
        %194 = vadd.xlane.f32.xlu0 %v193
        %v195 = vpop.xlane.xlu0 %194
        %v196 = vsel %vm183, %v146, 0.0
        %197 = vadd.xlane.f32.xlu0 %v196
        %v198 = vpop.xlane.xlu0 %197
        %v199 = vsel %vm183, %v147, 0.0
        %200 = vadd.xlane.f32.xlu0 %v199
        %v201 = vpop.xlane.xlu0 %200
        %v202 = vsel %vm183, %v148, 0.0
        %203 = vadd.xlane.f32.xlu0 %v202
        %v204 = vpop.xlane.xlu0 %203
        %v205 = vsel %vm183, %v149, 0.0
        %206 = vadd.xlane.f32.xlu0 %v205
        %v207 = vpop.xlane.xlu0 %206
        %v208 = vsel %vm183, %v150, 0.0
        %209 = vadd.xlane.f32.xlu0 %v208
        %v210 = vpop.xlane.xlu0 %209
        %v211 = vsel %vm183, %v151, 0.0
        %212 = vadd.xlane.f32.xlu0 %v211
        %v213 = vpop.xlane.xlu0 %212
        %v214 = vsel %vm183, %v152, 0.0
        %215 = vadd.xlane.f32.xlu0 %v214
        %v216 = vpop.xlane.xlu0 %215
        %v217 = vsel %vm183, %v153, 0.0
        %218 = vadd.xlane.f32.xlu0 %v217
        %v219 = vpop.xlane.xlu0 %218
        %v220 = vsel %vm183, %v154, 0.0
        %221 = vadd.xlane.f32.xlu0 %v220
        %v222 = vpop.xlane.xlu0 %221
        %v223 = vsel %vm183, %v155, 0.0
        %224 = vadd.xlane.f32.xlu0 %v223
        %v225 = vpop.xlane.xlu0 %224
        %v226 = vsel %vm183, %v156, 0.0
        %227 = vadd.xlane.f32.xlu0 %v226
        %v228 = vpop.xlane.xlu0 %227
        %v229 = vsel %vm183, %v157, 0.0
        %230 = vadd.xlane.f32.xlu0 %v229
        %v231 = vpop.xlane.xlu0 %230
        %v232 = vsel %vm183, %v158, 0.0
        %233 = vadd.xlane.f32.xlu0 %v232
        %v234 = vpop.xlane.xlu0 %233
        %v235 = vsel %vm183, %v159, 0.0
        %236 = vadd.xlane.f32.xlu0 %v235
        %v237 = vpop.xlane.xlu0 %236
        %v238 = vsel %vm183, %v160, 0.0
        %239 = vadd.xlane.f32.xlu0 %v238
        %v240 = vpop.xlane.xlu0 %239
        %v241 = vsel %vm183, %v161, 0.0
        %242 = vadd.xlane.f32.xlu0 %v241
        %v243 = vpop.xlane.xlu0 %242
        %v244 = vsel %vm183, %v162, 0.0
        %245 = vadd.xlane.f32.xlu0 %v244
        %v246 = vpop.xlane.xlu0 %245
        %v247 = vsel %vm183, %v163, 0.0
        %248 = vadd.xlane.f32.xlu0 %v247
        %v249 = vpop.xlane.xlu0 %248
        %v250 = vsel %vm183, %v164, 0.0
        %251 = vadd.xlane.f32.xlu0 %v250
        %v252 = vpop.xlane.xlu0 %251
        %v253 = vsel %vm183, %v165, 0.0
        %254 = vadd.xlane.f32.xlu0 %v253
        %v255 = vpop.xlane.xlu0 %254
        %v256 = vsel %vm183, %v166, 0.0
        %257 = vadd.xlane.f32.xlu0 %v256
        %v258 = vpop.xlane.xlu0 %257
        %v259 = vsel %vm183, %v167, 0.0
        %260 = vadd.xlane.f32.xlu0 %v259
        %v261 = vpop.xlane.xlu0 %260
        %v262 = vsel %vm183, %v168, 0.0
        %263 = vadd.xlane.f32.xlu0 %v262
        %v264 = vpop.xlane.xlu0 %263
        %v265 = vsel %vm183, %v169, 0.0
        %266 = vadd.xlane.f32.xlu0 %v265
        %v267 = vpop.xlane.xlu0 %266
        %v268 = vsel %vm183, %v170, 0.0
        %269 = vadd.xlane.f32.xlu0 %v268
        %v270 = vpop.xlane.xlu0 %269
        %v271 = vsel %vm183, %v171, 0.0
        %272 = vadd.xlane.f32.xlu0 %v271
        %v273 = vpop.xlane.xlu0 %272
        %v274 = vsel %vm183, %v172, 0.0
        %275 = vadd.xlane.f32.xlu0 %v274
        %v276 = vpop.xlane.xlu0 %275
        %v277 = vsel %vm183, %v173, 0.0
        %278 = vadd.xlane.f32.xlu0 %v277
        %v279 = vpop.xlane.xlu0 %278
        %v280 = vrcp.pop 64.0
        %v281 = vmul.f32 %v186, %v280
        %v282 = vmul.f32 %v189, %v280
        %v283 = vmul.f32 %v192, %v280
        %v284 = vmul.f32 %v195, %v280
        %v285 = vmul.f32 %v198, %v280
        %v286 = vmul.f32 %v201, %v280
        %v287 = vmul.f32 %v204, %v280
        %v288 = vmul.f32 %v207, %v280
        %v289 = vmul.f32 %v210, %v280
        %v290 = vmul.f32 %v213, %v280
        %v291 = vmul.f32 %v216, %v280
        %v292 = vmul.f32 %v219, %v280
        %v293 = vmul.f32 %v222, %v280
        %v294 = vmul.f32 %v225, %v280
        %v295 = vmul.f32 %v228, %v280
        %v296 = vmul.f32 %v231, %v280
        %v297 = vmul.f32 %v234, %v280
        %v298 = vmul.f32 %v237, %v280
        %v299 = vmul.f32 %v240, %v280
        %v300 = vmul.f32 %v243, %v280
        %v301 = vmul.f32 %v246, %v280
        %v302 = vmul.f32 %v249, %v280
        %v303 = vmul.f32 %v252, %v280
        %v304 = vmul.f32 %v255, %v280
        %v305 = vmul.f32 %v258, %v280
        %v306 = vmul.f32 %v261, %v280
        %v307 = vmul.f32 %v264, %v280
        %v308 = vmul.f32 %v267, %v280
        %v309 = vmul.f32 %v270, %v280
        %v310 = vmul.f32 %v273, %v280
        %v311 = vmul.f32 %v276, %v280
        %v312 = vmul.f32 %v279, %v280
        %v345 = vlaneseq
        %v346 = vand.u32 %v345, 127
        %v347 = vlaneseq
        %v348 = vshrl.u32 %v347, 7
        %v349 = vsub.s32 %v346, %v348
        %v350 = vrot.slane %v281, %v349
        %v351 = vadd.s32 %v346, 4294967288
        %v352 = vlaneseq
        %v353 = vshrl.u32 %v352, 7
        %v354 = vsub.s32 %v351, %v353
        %v355 = vrot.slane %v282, %v354
        %vm356 = vcmask 130112
        %v357 = vsel %vm356, %v355, %v350
        %v358 = vlaneseq
        %v359 = vshrl.u32 %v358, 7
        %v360 = vsub.s32 %v346, %v359
        %v361 = vrot.slane %v283, %v360
        %v362 = vlaneseq
        %v363 = vshrl.u32 %v362, 7
        %v364 = vsub.s32 %v351, %v363
        %v365 = vrot.slane %v284, %v364
        %v366 = vsel %vm356, %v365, %v361
        %v367 = vlaneseq
        %v368 = vshrl.u32 %v367, 7
        %v369 = vsub.s32 %v346, %v368
        %v370 = vrot.slane %v285, %v369
        %v371 = vlaneseq
        %v372 = vshrl.u32 %v371, 7
        %v373 = vsub.s32 %v351, %v372
        %v374 = vrot.slane %v286, %v373
        %v375 = vsel %vm356, %v374, %v370
        %v376 = vlaneseq
        %v377 = vshrl.u32 %v376, 7
        %v378 = vsub.s32 %v346, %v377
        %v379 = vrot.slane %v287, %v378
        %v380 = vlaneseq
        %v381 = vshrl.u32 %v380, 7
        %v382 = vsub.s32 %v351, %v381
        %v383 = vrot.slane %v288, %v382
        %v384 = vsel %vm356, %v383, %v379
        %v385 = vlaneseq
        %v386 = vshrl.u32 %v385, 7
        %v387 = vsub.s32 %v346, %v386
        %v388 = vrot.slane %v289, %v387
        %v389 = vlaneseq
        %v390 = vshrl.u32 %v389, 7
        %v391 = vsub.s32 %v351, %v390
        %v392 = vrot.slane %v290, %v391
        %v393 = vsel %vm356, %v392, %v388
        %v394 = vlaneseq
        %v395 = vshrl.u32 %v394, 7
        %v396 = vsub.s32 %v346, %v395
        %v397 = vrot.slane %v291, %v396
        %v398 = vlaneseq
        %v399 = vshrl.u32 %v398, 7
        %v400 = vsub.s32 %v351, %v399
        %v401 = vrot.slane %v292, %v400
        %v402 = vsel %vm356, %v401, %v397
        %v403 = vlaneseq
        %v404 = vshrl.u32 %v403, 7
        %v405 = vsub.s32 %v346, %v404
        %v406 = vrot.slane %v293, %v405
        %v407 = vlaneseq
        %v408 = vshrl.u32 %v407, 7
        %v409 = vsub.s32 %v351, %v408
        %v410 = vrot.slane %v294, %v409
        %v411 = vsel %vm356, %v410, %v406
        %v412 = vlaneseq
        %v413 = vshrl.u32 %v412, 7
        %v414 = vsub.s32 %v346, %v413
        %v415 = vrot.slane %v295, %v414
        %v416 = vlaneseq
        %v417 = vshrl.u32 %v416, 7
        %v418 = vsub.s32 %v351, %v417
        %v419 = vrot.slane %v296, %v418
        %v420 = vsel %vm356, %v419, %v415
        %v421 = vlaneseq
        %v422 = vshrl.u32 %v421, 7
        %v423 = vsub.s32 %v346, %v422
        %v424 = vrot.slane %v297, %v423
        %v425 = vlaneseq
        %v426 = vshrl.u32 %v425, 7
        %v427 = vsub.s32 %v351, %v426
        %v428 = vrot.slane %v298, %v427
        %v429 = vsel %vm356, %v428, %v424
        %v430 = vlaneseq
        %v431 = vshrl.u32 %v430, 7
        %v432 = vsub.s32 %v346, %v431
        %v433 = vrot.slane %v299, %v432
        %v434 = vlaneseq
        %v435 = vshrl.u32 %v434, 7
        %v436 = vsub.s32 %v351, %v435
        %v437 = vrot.slane %v300, %v436
        %v438 = vsel %vm356, %v437, %v433
        %v439 = vlaneseq
        %v440 = vshrl.u32 %v439, 7
        %v441 = vsub.s32 %v346, %v440
        %v442 = vrot.slane %v301, %v441
        %v443 = vlaneseq
        %v444 = vshrl.u32 %v443, 7
        %v445 = vsub.s32 %v351, %v444
        %v446 = vrot.slane %v302, %v445
        %v447 = vsel %vm356, %v446, %v442
        %v448 = vlaneseq
        %v449 = vshrl.u32 %v448, 7
        %v450 = vsub.s32 %v346, %v449
        %v451 = vrot.slane %v303, %v450
        %v452 = vlaneseq
        %v453 = vshrl.u32 %v452, 7
        %v454 = vsub.s32 %v351, %v453
        %v455 = vrot.slane %v304, %v454
        %v456 = vsel %vm356, %v455, %v451
        %v457 = vlaneseq
        %v458 = vshrl.u32 %v457, 7
        %v459 = vsub.s32 %v346, %v458
        %v460 = vrot.slane %v305, %v459
        %v461 = vlaneseq
        %v462 = vshrl.u32 %v461, 7
        %v463 = vsub.s32 %v351, %v462
        %v464 = vrot.slane %v306, %v463
        %v465 = vsel %vm356, %v464, %v460
        %v466 = vlaneseq
        %v467 = vshrl.u32 %v466, 7
        %v468 = vsub.s32 %v346, %v467
        %v469 = vrot.slane %v307, %v468
        %v470 = vlaneseq
        %v471 = vshrl.u32 %v470, 7
        %v472 = vsub.s32 %v351, %v471
        %v473 = vrot.slane %v308, %v472
        %v474 = vsel %vm356, %v473, %v469
        %v475 = vlaneseq
        %v476 = vshrl.u32 %v475, 7
        %v477 = vsub.s32 %v346, %v476
        %v478 = vrot.slane %v309, %v477
        %v479 = vlaneseq
        %v480 = vshrl.u32 %v479, 7
        %v481 = vsub.s32 %v351, %v480
        %v482 = vrot.slane %v310, %v481
        %v483 = vsel %vm356, %v482, %v478
        %v484 = vlaneseq
        %v485 = vshrl.u32 %v484, 7
        %v486 = vsub.s32 %v346, %v485
        %v487 = vrot.slane %v311, %v486
        %v488 = vlaneseq
        %v489 = vshrl.u32 %v488, 7
        %v490 = vsub.s32 %v351, %v489
        %v491 = vrot.slane %v312, %v490
        %v492 = vsel %vm356, %v491, %v487
        %vm493 = vcmask 1041409
        %v494 = vsel %vm493, %v366, %v357
        %vm495 = vcmask 1042434
        %v496 = vsel %vm495, %v375, %v494
        %vm497 = vcmask 1043459
        %v498 = vsel %vm497, %v384, %v496
        %vm499 = vcmask 1044484
        %v500 = vsel %vm499, %v393, %v498
        %vm501 = vcmask 1045509
        %v502 = vsel %vm501, %v402, %v500
        %vm503 = vcmask 1046534
        %v504 = vsel %vm503, %v411, %v502
        %vm505 = vcmask 1047559
        %v506 = vsel %vm505, %v420, %v504
        %v507 = vsel %vm493, %v438, %v429
        %v508 = vsel %vm495, %v447, %v507
        %v509 = vsel %vm497, %v456, %v508
        %v510 = vsel %vm499, %v465, %v509
        %v511 = vsel %vm501, %v474, %v510
        %v512 = vsel %vm503, %v483, %v511
        %v513 = vsel %vm505, %v492, %v512
        %516 = vst.msk [vmem:[#allocation2 + $0x8] sm:$0xff] %vm174, %v506
        %517 = vst.msk [vmem:[#allocation2 + $0x10] sm:$0xff] %vm174, %v513
        %v518 = vsel %vm183, %v142, -inf
        %519 = vmax.xlane.f32.xlu0 %v518
        %v520 = vpop.xlane.xlu0 %519
        %v521 = vsel %vm183, %v143, -inf
        %522 = vmax.xlane.f32.xlu0 %v521
        %v523 = vpop.xlane.xlu0 %522
        %v524 = vsel %vm183, %v144, -inf
        %525 = vmax.xlane.f32.xlu0 %v524
        %v526 = vpop.xlane.xlu0 %525
        %v527 = vsel %vm183, %v145, -inf
        %528 = vmax.xlane.f32.xlu0 %v527
        %v529 = vpop.xlane.xlu0 %528
        %v530 = vsel %vm183, %v146, -inf
        %531 = vmax.xlane.f32.xlu0 %v530
        %v532 = vpop.xlane.xlu0 %531
        %v533 = vsel %vm183, %v147, -inf
        %534 = vmax.xlane.f32.xlu0 %v533
        %v535 = vpop.xlane.xlu0 %534
        %v536 = vsel %vm183, %v148, -inf
        %537 = vmax.xlane.f32.xlu0 %v536
        %v538 = vpop.xlane.xlu0 %537
        %v539 = vsel %vm183, %v149, -inf
        %540 = vmax.xlane.f32.xlu0 %v539
        %v541 = vpop.xlane.xlu0 %540
        %v542 = vsel %vm183, %v150, -inf
        %543 = vmax.xlane.f32.xlu0 %v542
        %v544 = vpop.xlane.xlu0 %543
        %v545 = vsel %vm183, %v151, -inf
        %546 = vmax.xlane.f32.xlu0 %v545
        %v547 = vpop.xlane.xlu0 %546
        %v548 = vsel %vm183, %v152, -inf
        %549 = vmax.xlane.f32.xlu0 %v548
        %v550 = vpop.xlane.xlu0 %549
        %v551 = vsel %vm183, %v153, -inf
        %552 = vmax.xlane.f32.xlu0 %v551
        %v553 = vpop.xlane.xlu0 %552
        %v554 = vsel %vm183, %v154, -inf
        %555 = vmax.xlane.f32.xlu0 %v554
        %v556 = vpop.xlane.xlu0 %555
        %v557 = vsel %vm183, %v155, -inf
        %558 = vmax.xlane.f32.xlu0 %v557
        %v559 = vpop.xlane.xlu0 %558
        %v560 = vsel %vm183, %v156, -inf
        %561 = vmax.xlane.f32.xlu0 %v560
        %v562 = vpop.xlane.xlu0 %561
        %v563 = vsel %vm183, %v157, -inf
        %564 = vmax.xlane.f32.xlu0 %v563
        %v565 = vpop.xlane.xlu0 %564
        %v566 = vsel %vm183, %v158, -inf
        %567 = vmax.xlane.f32.xlu0 %v566
        %v568 = vpop.xlane.xlu0 %567
        %v569 = vsel %vm183, %v159, -inf
        %570 = vmax.xlane.f32.xlu0 %v569
        %v571 = vpop.xlane.xlu0 %570
        %v572 = vsel %vm183, %v160, -inf
        %573 = vmax.xlane.f32.xlu0 %v572
        %v574 = vpop.xlane.xlu0 %573
        %v575 = vsel %vm183, %v161, -inf
        %576 = vmax.xlane.f32.xlu0 %v575
        %v577 = vpop.xlane.xlu0 %576
        %v578 = vsel %vm183, %v162, -inf
        %579 = vmax.xlane.f32.xlu0 %v578
        %v580 = vpop.xlane.xlu0 %579
        %v581 = vsel %vm183, %v163, -inf
        %582 = vmax.xlane.f32.xlu0 %v581
        %v583 = vpop.xlane.xlu0 %582
        %v584 = vsel %vm183, %v164, -inf
        %585 = vmax.xlane.f32.xlu0 %v584
        %v586 = vpop.xlane.xlu0 %585
        %v587 = vsel %vm183, %v165, -inf
        %588 = vmax.xlane.f32.xlu0 %v587
        %v589 = vpop.xlane.xlu0 %588
        %v590 = vsel %vm183, %v166, -inf
        %591 = vmax.xlane.f32.xlu0 %v590
        %v592 = vpop.xlane.xlu0 %591
        %v593 = vsel %vm183, %v167, -inf
        %594 = vmax.xlane.f32.xlu0 %v593
        %v595 = vpop.xlane.xlu0 %594
        %v596 = vsel %vm183, %v168, -inf
        %597 = vmax.xlane.f32.xlu0 %v596
        %v598 = vpop.xlane.xlu0 %597
        %v599 = vsel %vm183, %v169, -inf
        %600 = vmax.xlane.f32.xlu0 %v599
        %v601 = vpop.xlane.xlu0 %600
        %v602 = vsel %vm183, %v170, -inf
        %603 = vmax.xlane.f32.xlu0 %v602
        %v604 = vpop.xlane.xlu0 %603
        %v605 = vsel %vm183, %v171, -inf
        %606 = vmax.xlane.f32.xlu0 %v605
        %v607 = vpop.xlane.xlu0 %606
        %v608 = vsel %vm183, %v172, -inf
        %609 = vmax.xlane.f32.xlu0 %v608
        %v610 = vpop.xlane.xlu0 %609
        %v611 = vsel %vm183, %v173, -inf
        %612 = vmax.xlane.f32.xlu0 %v611
        %v613 = vpop.xlane.xlu0 %612
        %v646 = vlaneseq
        %v647 = vshrl.u32 %v646, 7
        %v648 = vsub.s32 %v346, %v647
        %v649 = vrot.slane %v520, %v648
        %v650 = vlaneseq
        %v651 = vshrl.u32 %v650, 7
        %v652 = vsub.s32 %v351, %v651
        %v653 = vrot.slane %v523, %v652
        %v654 = vsel %vm356, %v653, %v649
        %v655 = vlaneseq
        %v656 = vshrl.u32 %v655, 7
        %v657 = vsub.s32 %v346, %v656
        %v658 = vrot.slane %v526, %v657
        %v659 = vlaneseq
        %v660 = vshrl.u32 %v659, 7
        %v661 = vsub.s32 %v351, %v660
        %v662 = vrot.slane %v529, %v661
        %v663 = vsel %vm356, %v662, %v658
        %v664 = vlaneseq
        %v665 = vshrl.u32 %v664, 7
        %v666 = vsub.s32 %v346, %v665
        %v667 = vrot.slane %v532, %v666
        %v668 = vlaneseq
        %v669 = vshrl.u32 %v668, 7
        %v670 = vsub.s32 %v351, %v669
        %v671 = vrot.slane %v535, %v670
        %v672 = vsel %vm356, %v671, %v667
        %v673 = vlaneseq
        %v674 = vshrl.u32 %v673, 7
        %v675 = vsub.s32 %v346, %v674
        %v676 = vrot.slane %v538, %v675
        %v677 = vlaneseq
        %v678 = vshrl.u32 %v677, 7
        %v679 = vsub.s32 %v351, %v678
        %v680 = vrot.slane %v541, %v679
        %v681 = vsel %vm356, %v680, %v676
        %v682 = vlaneseq
        %v683 = vshrl.u32 %v682, 7
        %v684 = vsub.s32 %v346, %v683
        %v685 = vrot.slane %v544, %v684
        %v686 = vlaneseq
        %v687 = vshrl.u32 %v686, 7
        %v688 = vsub.s32 %v351, %v687
        %v689 = vrot.slane %v547, %v688
        %v690 = vsel %vm356, %v689, %v685
        %v691 = vlaneseq
        %v692 = vshrl.u32 %v691, 7
        %v693 = vsub.s32 %v346, %v692
        %v694 = vrot.slane %v550, %v693
        %v695 = vlaneseq
        %v696 = vshrl.u32 %v695, 7
        %v697 = vsub.s32 %v351, %v696
        %v698 = vrot.slane %v553, %v697
        %v699 = vsel %vm356, %v698, %v694
        %v700 = vlaneseq
        %v701 = vshrl.u32 %v700, 7
        %v702 = vsub.s32 %v346, %v701
        %v703 = vrot.slane %v556, %v702
        %v704 = vlaneseq
        %v705 = vshrl.u32 %v704, 7
        %v706 = vsub.s32 %v351, %v705
        %v707 = vrot.slane %v559, %v706
        %v708 = vsel %vm356, %v707, %v703
        %v709 = vlaneseq
        %v710 = vshrl.u32 %v709, 7
        %v711 = vsub.s32 %v346, %v710
        %v712 = vrot.slane %v562, %v711
        %v713 = vlaneseq
        %v714 = vshrl.u32 %v713, 7
        %v715 = vsub.s32 %v351, %v714
        %v716 = vrot.slane %v565, %v715
        %v717 = vsel %vm356, %v716, %v712
        %v718 = vlaneseq
        %v719 = vshrl.u32 %v718, 7
        %v720 = vsub.s32 %v346, %v719
        %v721 = vrot.slane %v568, %v720
        %v722 = vlaneseq
        %v723 = vshrl.u32 %v722, 7
        %v724 = vsub.s32 %v351, %v723
        %v725 = vrot.slane %v571, %v724
        %v726 = vsel %vm356, %v725, %v721
        %v727 = vlaneseq
        %v728 = vshrl.u32 %v727, 7
        %v729 = vsub.s32 %v346, %v728
        %v730 = vrot.slane %v574, %v729
        %v731 = vlaneseq
        %v732 = vshrl.u32 %v731, 7
        %v733 = vsub.s32 %v351, %v732
        %v734 = vrot.slane %v577, %v733
        %v735 = vsel %vm356, %v734, %v730
        %v736 = vlaneseq
        %v737 = vshrl.u32 %v736, 7
        %v738 = vsub.s32 %v346, %v737
        %v739 = vrot.slane %v580, %v738
        %v740 = vlaneseq
        %v741 = vshrl.u32 %v740, 7
        %v742 = vsub.s32 %v351, %v741
        %v743 = vrot.slane %v583, %v742
        %v744 = vsel %vm356, %v743, %v739
        %v745 = vlaneseq
        %v746 = vshrl.u32 %v745, 7
        %v747 = vsub.s32 %v346, %v746
        %v748 = vrot.slane %v586, %v747
        %v749 = vlaneseq
        %v750 = vshrl.u32 %v749, 7
        %v751 = vsub.s32 %v351, %v750
        %v752 = vrot.slane %v589, %v751
        %v753 = vsel %vm356, %v752, %v748
        %v754 = vlaneseq
        %v755 = vshrl.u32 %v754, 7
        %v756 = vsub.s32 %v346, %v755
        %v757 = vrot.slane %v592, %v756
        %v758 = vlaneseq
        %v759 = vshrl.u32 %v758, 7
        %v760 = vsub.s32 %v351, %v759
        %v761 = vrot.slane %v595, %v760
        %v762 = vsel %vm356, %v761, %v757
        %v763 = vlaneseq
        %v764 = vshrl.u32 %v763, 7
        %v765 = vsub.s32 %v346, %v764
        %v766 = vrot.slane %v598, %v765
        %v767 = vlaneseq
        %v768 = vshrl.u32 %v767, 7
        %v769 = vsub.s32 %v351, %v768
        %v770 = vrot.slane %v601, %v769
        %v771 = vsel %vm356, %v770, %v766
        %v772 = vlaneseq
        %v773 = vshrl.u32 %v772, 7
        %v774 = vsub.s32 %v346, %v773
        %v775 = vrot.slane %v604, %v774
        %v776 = vlaneseq
        %v777 = vshrl.u32 %v776, 7
        %v778 = vsub.s32 %v351, %v777
        %v779 = vrot.slane %v607, %v778
        %v780 = vsel %vm356, %v779, %v775
        %v781 = vlaneseq
        %v782 = vshrl.u32 %v781, 7
        %v783 = vsub.s32 %v346, %v782
        %v784 = vrot.slane %v610, %v783
        %v785 = vlaneseq
        %v786 = vshrl.u32 %v785, 7
        %v787 = vsub.s32 %v351, %v786
        %v788 = vrot.slane %v613, %v787
        %v789 = vsel %vm356, %v788, %v784
        %v790 = vsel %vm493, %v663, %v654
        %v791 = vsel %vm495, %v672, %v790
        %v792 = vsel %vm497, %v681, %v791
        %v793 = vsel %vm499, %v690, %v792
        %v794 = vsel %vm501, %v699, %v793
        %v795 = vsel %vm503, %v708, %v794
        %v796 = vsel %vm505, %v717, %v795
        %v797 = vsel %vm493, %v735, %v726
        %v798 = vsel %vm495, %v744, %v797
        %v799 = vsel %vm497, %v753, %v798
        %v800 = vsel %vm499, %v762, %v799
        %v801 = vsel %vm501, %v771, %v800
        %v802 = vsel %vm503, %v780, %v801
        %v803 = vsel %vm505, %v789, %v802
        %s806 = scalar_lea.vmem [#allocation2], 32
        %807 = vst.msk [vmem:[%s806 + $0x8] sm:$0xff] %vm174, %v796
        %808 = vst.msk [vmem:[%s806 + $0x10] sm:$0xff] %vm174, %v803
        %809 = vst [vmem:[#allocation3] sm:$0xff] 0.0
        %810 = vst [vmem:[#allocation3 + $0x8] sm:$0xff] 0.0
        %811 = vst [vmem:[#allocation3 + $0x10] sm:$0xff] 0.0
        %812 = vst [vmem:[#allocation3 + $0x18] sm:$0xff] 0.0
        %813 = vst [vmem:[#allocation3 + $0x20] sm:$0xff] 0.0
        %814 = vst [vmem:[#allocation3 + $0x28] sm:$0xff] 0.0
        %815 = vst [vmem:[#allocation3 + $0x30] sm:$0xff] 0.0
        %816 = vst [vmem:[#allocation3 + $0x38] sm:$0xff] 0.0
        %817 = vst [vmem:[#allocation3 + $0x40] sm:$0xff] 0.0
        %818 = vst [vmem:[#allocation3 + $0x48] sm:$0xff] 0.0
        %819 = vst [vmem:[#allocation3 + $0x50] sm:$0xff] 0.0
        %820 = vst [vmem:[#allocation3 + $0x58] sm:$0xff] 0.0
        %821 = vst [vmem:[#allocation3 + $0x60] sm:$0xff] 0.0
        %822 = vst [vmem:[#allocation3 + $0x68] sm:$0xff] 0.0
        %823 = vst [vmem:[#allocation3 + $0x70] sm:$0xff] 0.0
        %824 = vst [vmem:[#allocation3 + $0x78] sm:$0xff] 0.0
        %825 = vst [vmem:[#allocation3 + $0x80] sm:$0xff] 0.0
        %826 = vst [vmem:[#allocation3 + $0x88] sm:$0xff] 0.0
        %827 = vst [vmem:[#allocation3 + $0x90] sm:$0xff] 0.0
        %828 = vst [vmem:[#allocation3 + $0x98] sm:$0xff] 0.0
        %829 = vst [vmem:[#allocation3 + $0xa0] sm:$0xff] 0.0
        %830 = vst [vmem:[#allocation3 + $0xa8] sm:$0xff] 0.0
        %831 = vst [vmem:[#allocation3 + $0xb0] sm:$0xff] 0.0
        %832 = vst [vmem:[#allocation3 + $0xb8] sm:$0xff] 0.0
        %833 = vst [vmem:[#allocation3 + $0xc0] sm:$0xff] 0.0
        %834 = vst [vmem:[#allocation3 + $0xc8] sm:$0xff] 0.0
        %835 = vst [vmem:[#allocation3 + $0xd0] sm:$0xff] 0.0
        %836 = vst [vmem:[#allocation3 + $0xd8] sm:$0xff] 0.0
        %v837 = vld [vmem:[#allocation2 + $0x5] sm:$0xff]
        %v838 = vld [vmem:[#allocation2 + $0xd] sm:$0xff]
        %839 = vst.msk [vmem:[#allocation3] sm:$0xff] %vm174, %v837
        %840 = vst.msk [vmem:[#allocation3 + $0x70] sm:$0xff] %vm174, %v838
        %v841 = vld [vmem:[#allocation2 + $0x6] sm:$0xff]
        %v842 = vld [vmem:[#allocation2 + $0xe] sm:$0xff]
        %843 = vst.msk [vmem:[#allocation3 + $0x8] sm:$0xff] %vm174, %v841
        %844 = vst.msk [vmem:[#allocation3 + $0x78] sm:$0xff] %vm174, %v842
        %v845 = vld [vmem:[#allocation2 + $0x7] sm:$0xff]
        %v846 = vld [vmem:[#allocation2 + $0xf] sm:$0xff]
        %847 = vst.msk [vmem:[#allocation3 + $0x10] sm:$0xff] %vm174, %v845
        %848 = vst.msk [vmem:[#allocation3 + $0x80] sm:$0xff] %vm174, %v846
        %v849 = vld [vmem:[#allocation2 + $0x8] sm:$0xff]
        %v850 = vld [vmem:[#allocation2 + $0x10] sm:$0xff]
        %851 = vst.msk [vmem:[#allocation3 + $0x18] sm:$0xff] %vm174, %v849
        %852 = vst.msk [vmem:[#allocation3 + $0x88] sm:$0xff] %vm174, %v850
        %v853 = vld [vmem:[#allocation2 + $0x9] sm:$0xff]
        %v854 = vld [vmem:[#allocation2 + $0x11] sm:$0xff]
        %855 = vst.msk [vmem:[#allocation3 + $0x20] sm:$0xff] %vm174, %v853
        %856 = vst.msk [vmem:[#allocation3 + $0x90] sm:$0xff] %vm174, %v854
        %v857 = vld [vmem:[#allocation2 + $0xa] sm:$0xff]
        %v858 = vld [vmem:[#allocation2 + $0x12] sm:$0xff]
        %859 = vst.msk [vmem:[#allocation3 + $0x28] sm:$0xff] %vm174, %v857
        %860 = vst.msk [vmem:[#allocation3 + $0x98] sm:$0xff] %vm174, %v858
        %v861 = vld [vmem:[#allocation2 + $0xb] sm:$0xff]
        %v862 = vld [vmem:[#allocation2 + $0x13] sm:$0xff]
        %863 = vst.msk [vmem:[#allocation3 + $0x30] sm:$0xff] %vm174, %v861
        %864 = vst.msk [vmem:[#allocation3 + $0xa0] sm:$0xff] %vm174, %v862
        %v865 = vld [vmem:[%s806 + $0x5] sm:$0xff]
        %v866 = vld [vmem:[%s806 + $0xd] sm:$0xff]
        %867 = vst.msk [vmem:[#allocation3 + $0x38] sm:$0xff] %vm174, %v865
        %868 = vst.msk [vmem:[#allocation3 + $0xa8] sm:$0xff] %vm174, %v866
        %v869 = vld [vmem:[%s806 + $0x6] sm:$0xff]
        %v870 = vld [vmem:[%s806 + $0xe] sm:$0xff]
        %871 = vst.msk [vmem:[#allocation3 + $0x40] sm:$0xff] %vm174, %v869
        %872 = vst.msk [vmem:[#allocation3 + $0xb0] sm:$0xff] %vm174, %v870
        %v873 = vld [vmem:[%s806 + $0x7] sm:$0xff]
        %v874 = vld [vmem:[%s806 + $0xf] sm:$0xff]
        %875 = vst.msk [vmem:[#allocation3 + $0x48] sm:$0xff] %vm174, %v873
        %876 = vst.msk [vmem:[#allocation3 + $0xb8] sm:$0xff] %vm174, %v874
        %v877 = vld [vmem:[%s806 + $0x8] sm:$0xff]
        %v878 = vld [vmem:[%s806 + $0x10] sm:$0xff]
        %879 = vst.msk [vmem:[#allocation3 + $0x50] sm:$0xff] %vm174, %v877
        %880 = vst.msk [vmem:[#allocation3 + $0xc0] sm:$0xff] %vm174, %v878
        %v881 = vld [vmem:[%s806 + $0x9] sm:$0xff]
        %v882 = vld [vmem:[%s806 + $0x11] sm:$0xff]
        %883 = vst.msk [vmem:[#allocation3 + $0x58] sm:$0xff] %vm174, %v881
        %884 = vst.msk [vmem:[#allocation3 + $0xc8] sm:$0xff] %vm174, %v882
        %v885 = vld [vmem:[%s806 + $0xa] sm:$0xff]
        %v886 = vld [vmem:[%s806 + $0x12] sm:$0xff]
        %887 = vst.msk [vmem:[#allocation3 + $0x60] sm:$0xff] %vm174, %v885
        %888 = vst.msk [vmem:[#allocation3 + $0xd0] sm:$0xff] %vm174, %v886
        %v889 = vld [vmem:[%s806 + $0xb] sm:$0xff]
        %v890 = vld [vmem:[%s806 + $0x13] sm:$0xff]
        %891 = vst.msk [vmem:[#allocation3 + $0x68] sm:$0xff] %vm174, %v889
        %892 = vst.msk [vmem:[#allocation3 + $0xd8] sm:$0xff] %vm174, %v890
        %v893 = vld [vmem:[#allocation3] sm:$0xff]
        %v894 = vld [vmem:[#allocation3 + $0x8] sm:$0xff]
        %v895 = vld [vmem:[#allocation3 + $0x10] sm:$0xff]
        %v896 = vld [vmem:[#allocation3 + $0x18] sm:$0xff]
        %v897 = vld [vmem:[#allocation3 + $0x20] sm:$0xff]
        %v898 = vld [vmem:[#allocation3 + $0x28] sm:$0xff]
        %v899 = vld [vmem:[#allocation3 + $0x30] sm:$0xff]
        %v900 = vld [vmem:[#allocation3 + $0x38] sm:$0xff]
        %v901 = vld [vmem:[#allocation3 + $0x40] sm:$0xff]
        %v902 = vld [vmem:[#allocation3 + $0x48] sm:$0xff]
        %v903 = vld [vmem:[#allocation3 + $0x50] sm:$0xff]
        %v904 = vld [vmem:[#allocation3 + $0x58] sm:$0xff]
        %v905 = vld [vmem:[#allocation3 + $0x60] sm:$0xff]
        %v906 = vld [vmem:[#allocation3 + $0x68] sm:$0xff]
        %v907 = vld [vmem:[#allocation3 + $0x70] sm:$0xff]
        %v908 = vld [vmem:[#allocation3 + $0x78] sm:$0xff]
        %v909 = vld [vmem:[#allocation3 + $0x80] sm:$0xff]
        %v910 = vld [vmem:[#allocation3 + $0x88] sm:$0xff]
        %v911 = vld [vmem:[#allocation3 + $0x90] sm:$0xff]
        %v912 = vld [vmem:[#allocation3 + $0x98] sm:$0xff]
        %v913 = vld [vmem:[#allocation3 + $0xa0] sm:$0xff]
        %v914 = vld [vmem:[#allocation3 + $0xa8] sm:$0xff]
        %v915 = vld [vmem:[#allocation3 + $0xb0] sm:$0xff]
        %v916 = vld [vmem:[#allocation3 + $0xb8] sm:$0xff]
        %v917 = vld [vmem:[#allocation3 + $0xc0] sm:$0xff]
        %v918 = vld [vmem:[#allocation3 + $0xc8] sm:$0xff]
        %v919 = vld [vmem:[#allocation3 + $0xd0] sm:$0xff]
        %v920 = vld [vmem:[#allocation3 + $0xd8] sm:$0xff]
        %v921 = vld [vmem:[%s1] sm:$0xff]
        %v922 = vld [vmem:[%s1 + $0x8] sm:$0xff]
        %v923 = vld [vmem:[%s1 + $0x10] sm:$0xff]
        %v924 = vld [vmem:[%s1 + $0x18] sm:$0xff]
        %v925 = vld [vmem:[%s1 + $0x20] sm:$0xff]
        %v926 = vld [vmem:[%s1 + $0x28] sm:$0xff]
        %v927 = vld [vmem:[%s1 + $0x30] sm:$0xff]
        %v928 = vld [vmem:[%s1 + $0x38] sm:$0xff]
        %v929 = vld [vmem:[%s1 + $0x40] sm:$0xff]
        %v930 = vld [vmem:[%s1 + $0x48] sm:$0xff]
        %v931 = vld [vmem:[%s1 + $0x50] sm:$0xff]
        %v932 = vld [vmem:[%s1 + $0x58] sm:$0xff]
        %v933 = vld [vmem:[%s1 + $0x60] sm:$0xff]
        %v934 = vld [vmem:[%s1 + $0x68] sm:$0xff]
        %v935 = vld [vmem:[%s1 + $0x70] sm:$0xff]
        %v936 = vld [vmem:[%s1 + $0x78] sm:$0xff]
        %v937 = vld [vmem:[%s1 + $0x80] sm:$0xff]
        %v938 = vld [vmem:[%s1 + $0x88] sm:$0xff]
        %v939 = vld [vmem:[%s1 + $0x90] sm:$0xff]
        %v940 = vld [vmem:[%s1 + $0x98] sm:$0xff]
        %v941 = vld [vmem:[%s1 + $0xa0] sm:$0xff]
        %v942 = vld [vmem:[%s1 + $0xa8] sm:$0xff]
        %v943 = vld [vmem:[%s1 + $0xb0] sm:$0xff]
        %v944 = vld [vmem:[%s1 + $0xb8] sm:$0xff]
        %v945 = vld [vmem:[%s1 + $0xc0] sm:$0xff]
        %v946 = vld [vmem:[%s1 + $0xc8] sm:$0xff]
        %v947 = vld [vmem:[%s1 + $0xd0] sm:$0xff]
        %v948 = vld [vmem:[%s1 + $0xd8] sm:$0xff]
        %v949 = vld [vmem:[%s1 + $0xe0] sm:$0xff]
        %v950 = vld [vmem:[%s1 + $0xe8] sm:$0xff]
        %v951 = vld [vmem:[%s1 + $0xf0] sm:$0xff]
        %v952 = vld [vmem:[%s1 + $0xf8] sm:$0xff]
        %v953 = vld [vmem:[%s1 + $0x100] sm:$0xff]
        %v954 = vld [vmem:[%s1 + $0x108] sm:$0xff]
        %v955 = vld [vmem:[%s1 + $0x110] sm:$0xff]
        %v956 = vld [vmem:[%s1 + $0x118] sm:$0xff]
        %v957 = vld [vmem:[%s1 + $0x120] sm:$0xff]
        %v958 = vld [vmem:[%s1 + $0x128] sm:$0xff]
        %v959 = vld [vmem:[%s1 + $0x130] sm:$0xff]
        %v960 = vld [vmem:[%s1 + $0x138] sm:$0xff]
        %v961 = vld [vmem:[%s1 + $0x140] sm:$0xff]
        %v962 = vld [vmem:[%s1 + $0x148] sm:$0xff]
        %v963 = vld [vmem:[%s1 + $0x150] sm:$0xff]
        %v964 = vld [vmem:[%s1 + $0x158] sm:$0xff]
        %v965 = vld [vmem:[%s1 + $0x160] sm:$0xff]
        %v966 = vld [vmem:[%s1 + $0x168] sm:$0xff]
        %v967 = vld [vmem:[%s1 + $0x170] sm:$0xff]
        %v968 = vld [vmem:[%s1 + $0x178] sm:$0xff]
        %v969 = vld [vmem:[%s1 + $0x180] sm:$0xff]
        %v970 = vld [vmem:[%s1 + $0x188] sm:$0xff]
        %v971 = vld [vmem:[%s1 + $0x190] sm:$0xff]
        %v972 = vld [vmem:[%s1 + $0x198] sm:$0xff]
        %v973 = vld [vmem:[%s1 + $0x1a0] sm:$0xff]
        %v974 = vld [vmem:[%s1 + $0x1a8] sm:$0xff]
        %v975 = vld [vmem:[%s1 + $0x1b0] sm:$0xff]
        %v976 = vld [vmem:[%s1 + $0x1b8] sm:$0xff]
        %v977 = vld [vmem:[%s1 + $0x1c0] sm:$0xff]
        %v978 = vld [vmem:[%s1 + $0x1c8] sm:$0xff]
        %v979 = vld [vmem:[%s1 + $0x1d0] sm:$0xff]
        %v980 = vld [vmem:[%s1 + $0x1d8] sm:$0xff]
        %v981 = vld [vmem:[%s1 + $0x1e0] sm:$0xff]
        %v982 = vld [vmem:[%s1 + $0x1e8] sm:$0xff]
        %v983 = vld [vmem:[%s1 + $0x1f0] sm:$0xff]
        %v984 = vld [vmem:[%s1 + $0x1f8] sm:$0xff]
        %v985 = vld [vmem:[%s1 + $0x200] sm:$0xff]
        %v986 = vld [vmem:[%s1 + $0x208] sm:$0xff]
        %v987 = vld [vmem:[%s1 + $0x210] sm:$0xff]
        %v988 = vld [vmem:[%s1 + $0x218] sm:$0xff]
        %v989 = vld [vmem:[%s1 + $0x220] sm:$0xff]
        %v990 = vld [vmem:[%s1 + $0x228] sm:$0xff]
        %v991 = vld [vmem:[%s1 + $0x230] sm:$0xff]
        %v992 = vld [vmem:[%s1 + $0x238] sm:$0xff]
        %v993 = vld [vmem:[%s1 + $0x240] sm:$0xff]
        %v994 = vld [vmem:[%s1 + $0x248] sm:$0xff]
        %v995 = vld [vmem:[%s1 + $0x250] sm:$0xff]
        %v996 = vld [vmem:[%s1 + $0x258] sm:$0xff]
        %v997 = vld [vmem:[%s1 + $0x260] sm:$0xff]
        %v998 = vld [vmem:[%s1 + $0x268] sm:$0xff]
        %v999 = vld [vmem:[%s1 + $0x270] sm:$0xff]
        %v1000 = vld [vmem:[%s1 + $0x278] sm:$0xff]
        %v1001 = vld [vmem:[%s1 + $0x280] sm:$0xff]
        %v1002 = vld [vmem:[%s1 + $0x288] sm:$0xff]
        %v1003 = vld [vmem:[%s1 + $0x290] sm:$0xff]
        %v1004 = vld [vmem:[%s1 + $0x298] sm:$0xff]
        %v1005 = vld [vmem:[%s1 + $0x2a0] sm:$0xff]
        %v1006 = vld [vmem:[%s1 + $0x2a8] sm:$0xff]
        %v1007 = vld [vmem:[%s1 + $0x2b0] sm:$0xff]
        %v1008 = vld [vmem:[%s1 + $0x2b8] sm:$0xff]
        %v1009 = vld [vmem:[%s1 + $0x2c0] sm:$0xff]
        %v1010 = vld [vmem:[%s1 + $0x2c8] sm:$0xff]
        %v1011 = vld [vmem:[%s1 + $0x2d0] sm:$0xff]
        %v1012 = vld [vmem:[%s1 + $0x2d8] sm:$0xff]
        %v1013 = vld [vmem:[%s1 + $0x2e0] sm:$0xff]
        %v1014 = vld [vmem:[%s1 + $0x2e8] sm:$0xff]
        %v1015 = vld [vmem:[%s1 + $0x2f0] sm:$0xff]
        %v1016 = vld [vmem:[%s1 + $0x2f8] sm:$0xff]
        %v1017 = vld [vmem:[%s1 + $0x300] sm:$0xff]
        %v1018 = vld [vmem:[%s1 + $0x308] sm:$0xff]
        %v1019 = vld [vmem:[%s1 + $0x310] sm:$0xff]
        %v1020 = vld [vmem:[%s1 + $0x318] sm:$0xff]
        %v1021 = vld [vmem:[%s1 + $0x320] sm:$0xff]
        %v1022 = vld [vmem:[%s1 + $0x328] sm:$0xff]
        %v1023 = vld [vmem:[%s1 + $0x330] sm:$0xff]
        %v1024 = vld [vmem:[%s1 + $0x338] sm:$0xff]
        %v1025 = vld [vmem:[%s1 + $0x340] sm:$0xff]
        %v1026 = vld [vmem:[%s1 + $0x348] sm:$0xff]
        %v1027 = vld [vmem:[%s1 + $0x350] sm:$0xff]
        %v1028 = vld [vmem:[%s1 + $0x358] sm:$0xff]
        %v1029 = vld [vmem:[%s1 + $0x360] sm:$0xff]
        %v1030 = vld [vmem:[%s1 + $0x368] sm:$0xff]
        %v1031 = vld [vmem:[%s1 + $0x370] sm:$0xff]
        %v1032 = vld [vmem:[%s1 + $0x378] sm:$0xff]
        %v1033 = vld [vmem:[%s1 + $0x380] sm:$0xff]
        %v1034 = vld [vmem:[%s1 + $0x388] sm:$0xff]
        %v1035 = vld [vmem:[%s1 + $0x390] sm:$0xff]
        %v1036 = vld [vmem:[%s1 + $0x398] sm:$0xff]
        %v1037 = vld [vmem:[%s1 + $0x3a0] sm:$0xff]
        %v1038 = vld [vmem:[%s1 + $0x3a8] sm:$0xff]
        %v1039 = vld [vmem:[%s1 + $0x3b0] sm:$0xff]
        %v1040 = vld [vmem:[%s1 + $0x3b8] sm:$0xff]
        %v1041 = vld [vmem:[%s1 + $0x3c0] sm:$0xff]
        %v1042 = vld [vmem:[%s1 + $0x3c8] sm:$0xff]
        %v1043 = vld [vmem:[%s1 + $0x3d0] sm:$0xff]
        %v1044 = vld [vmem:[%s1 + $0x3d8] sm:$0xff]
        %v1045 = vld [vmem:[%s1 + $0x3e0] sm:$0xff]
        %v1046 = vld [vmem:[%s1 + $0x3e8] sm:$0xff]
        %v1047 = vld [vmem:[%s1 + $0x3f0] sm:$0xff]
        %v1048 = vld [vmem:[%s1 + $0x3f8] sm:$0xff]
        %v1049 = vld [vmem:[%s1 + $0x400] sm:$0xff]
        %v1050 = vld [vmem:[%s1 + $0x408] sm:$0xff]
        %v1051 = vld [vmem:[%s1 + $0x410] sm:$0xff]
        %v1052 = vld [vmem:[%s1 + $0x418] sm:$0xff]
        %v1053 = vld [vmem:[%s1 + $0x420] sm:$0xff]
        %v1054 = vld [vmem:[%s1 + $0x428] sm:$0xff]
        %v1055 = vld [vmem:[%s1 + $0x430] sm:$0xff]
        %v1056 = vld [vmem:[%s1 + $0x438] sm:$0xff]
        %v1057 = vld [vmem:[%s1 + $0x440] sm:$0xff]
        %v1058 = vld [vmem:[%s1 + $0x448] sm:$0xff]
        %v1059 = vld [vmem:[%s1 + $0x450] sm:$0xff]
        %v1060 = vld [vmem:[%s1 + $0x458] sm:$0xff]
        %v1061 = vld [vmem:[%s1 + $0x460] sm:$0xff]
        %v1062 = vld [vmem:[%s1 + $0x468] sm:$0xff]
        %v1063 = vld [vmem:[%s1 + $0x470] sm:$0xff]
        %v1064 = vld [vmem:[%s1 + $0x478] sm:$0xff]
        %v1065 = vld [vmem:[%s1 + $0x480] sm:$0xff]
        %v1066 = vld [vmem:[%s1 + $0x488] sm:$0xff]
        %v1067 = vld [vmem:[%s1 + $0x490] sm:$0xff]
        %v1068 = vld [vmem:[%s1 + $0x498] sm:$0xff]
        %v1069 = vld [vmem:[%s1 + $0x4a0] sm:$0xff]
        %v1070 = vld [vmem:[%s1 + $0x4a8] sm:$0xff]
        %v1071 = vld [vmem:[%s1 + $0x4b0] sm:$0xff]
        %v1072 = vld [vmem:[%s1 + $0x4b8] sm:$0xff]
        %v1073 = vld [vmem:[%s1 + $0x4c0] sm:$0xff]
        %v1074 = vld [vmem:[%s1 + $0x4c8] sm:$0xff]
        %v1075 = vld [vmem:[%s1 + $0x4d0] sm:$0xff]
        %v1076 = vld [vmem:[%s1 + $0x4d8] sm:$0xff]
        %v1077 = vld [vmem:[%s1 + $0x4e0] sm:$0xff]
        %v1078 = vld [vmem:[%s1 + $0x4e8] sm:$0xff]
        %v1079 = vld [vmem:[%s1 + $0x4f0] sm:$0xff]
        %v1080 = vld [vmem:[%s1 + $0x4f8] sm:$0xff]
        %v1081 = vld [vmem:[%s1 + $0x500] sm:$0xff]
        %v1082 = vld [vmem:[%s1 + $0x508] sm:$0xff]
        %v1083 = vld [vmem:[%s1 + $0x510] sm:$0xff]
        %v1084 = vld [vmem:[%s1 + $0x518] sm:$0xff]
        %v1085 = vld [vmem:[%s1 + $0x520] sm:$0xff]
        %v1086 = vld [vmem:[%s1 + $0x528] sm:$0xff]
        %v1087 = vld [vmem:[%s1 + $0x530] sm:$0xff]
        %v1088 = vld [vmem:[%s1 + $0x538] sm:$0xff]
        %v1089 = vld [vmem:[%s1 + $0x540] sm:$0xff]
        %v1090 = vld [vmem:[%s1 + $0x548] sm:$0xff]
        %v1091 = vld [vmem:[%s1 + $0x550] sm:$0xff]
        %v1092 = vld [vmem:[%s1 + $0x558] sm:$0xff]
        %v1093 = vld [vmem:[%s1 + $0x560] sm:$0xff]
        %v1094 = vld [vmem:[%s1 + $0x568] sm:$0xff]
        %v1095 = vld [vmem:[%s1 + $0x570] sm:$0xff]
        %v1096 = vld [vmem:[%s1 + $0x578] sm:$0xff]
        %v1097 = vld [vmem:[%s1 + $0x580] sm:$0xff]
        %v1098 = vld [vmem:[%s1 + $0x588] sm:$0xff]
        %v1099 = vld [vmem:[%s1 + $0x590] sm:$0xff]
        %v1100 = vld [vmem:[%s1 + $0x598] sm:$0xff]
        %v1101 = vld [vmem:[%s1 + $0x5a0] sm:$0xff]
        %v1102 = vld [vmem:[%s1 + $0x5a8] sm:$0xff]
        %v1103 = vld [vmem:[%s1 + $0x5b0] sm:$0xff]
        %v1104 = vld [vmem:[%s1 + $0x5b8] sm:$0xff]
        %v1105 = vld [vmem:[%s1 + $0x5c0] sm:$0xff]
        %v1106 = vld [vmem:[%s1 + $0x5c8] sm:$0xff]
        %v1107 = vld [vmem:[%s1 + $0x5d0] sm:$0xff]
        %v1108 = vld [vmem:[%s1 + $0x5d8] sm:$0xff]
        %v1109 = vld [vmem:[%s1 + $0x5e0] sm:$0xff]
        %v1110 = vld [vmem:[%s1 + $0x5e8] sm:$0xff]
        %v1111 = vld [vmem:[%s1 + $0x5f0] sm:$0xff]
        %v1112 = vld [vmem:[%s1 + $0x5f8] sm:$0xff]
        %v1113 = vld [vmem:[%s1 + $0x600] sm:$0xff]
        %v1114 = vld [vmem:[%s1 + $0x608] sm:$0xff]
        %v1115 = vld [vmem:[%s1 + $0x610] sm:$0xff]
        %v1116 = vld [vmem:[%s1 + $0x618] sm:$0xff]
        %v1117 = vld [vmem:[%s1 + $0x620] sm:$0xff]
        %v1118 = vld [vmem:[%s1 + $0x628] sm:$0xff]
        %v1119 = vld [vmem:[%s1 + $0x630] sm:$0xff]
        %v1120 = vld [vmem:[%s1 + $0x638] sm:$0xff]
        %v1121 = vld [vmem:[%s1 + $0x640] sm:$0xff]
        %v1122 = vld [vmem:[%s1 + $0x648] sm:$0xff]
        %v1123 = vld [vmem:[%s1 + $0x650] sm:$0xff]
        %v1124 = vld [vmem:[%s1 + $0x658] sm:$0xff]
        %v1125 = vld [vmem:[%s1 + $0x660] sm:$0xff]
        %v1126 = vld [vmem:[%s1 + $0x668] sm:$0xff]
        %v1127 = vld [vmem:[%s1 + $0x670] sm:$0xff]
        %v1128 = vld [vmem:[%s1 + $0x678] sm:$0xff]
        %v1129 = vld [vmem:[%s1 + $0x680] sm:$0xff]
        %v1130 = vld [vmem:[%s1 + $0x688] sm:$0xff]
        %v1131 = vld [vmem:[%s1 + $0x690] sm:$0xff]
        %v1132 = vld [vmem:[%s1 + $0x698] sm:$0xff]
        %v1133 = vld [vmem:[%s1 + $0x6a0] sm:$0xff]
        %v1134 = vld [vmem:[%s1 + $0x6a8] sm:$0xff]
        %v1135 = vld [vmem:[%s1 + $0x6b0] sm:$0xff]
        %v1136 = vld [vmem:[%s1 + $0x6b8] sm:$0xff]
        %v1137 = vld [vmem:[%s1 + $0x6c0] sm:$0xff]
        %v1138 = vld [vmem:[%s1 + $0x6c8] sm:$0xff]
        %v1139 = vld [vmem:[%s1 + $0x6d0] sm:$0xff]
        %v1140 = vld [vmem:[%s1 + $0x6d8] sm:$0xff]
        %v1141 = vld [vmem:[%s1 + $0x6e0] sm:$0xff]
        %v1142 = vld [vmem:[%s1 + $0x6e8] sm:$0xff]
        %v1143 = vld [vmem:[%s1 + $0x6f0] sm:$0xff]
        %v1144 = vld [vmem:[%s1 + $0x6f8] sm:$0xff]
        %1145 = vmatprep.subr.mxu0 0.0
        %1146 = vmatpush1.msra.mxu0 %v921
        %1147 = vmatprep.subr.mxu0 0.0
        %1148 = vmatpush1.msra.mxu0 %v922
        %1149 = vmatprep.subr.mxu0 0.0
        %1150 = vmatpush1.msra.mxu0 %v923
        %1151 = vmatprep.subr.mxu0 0.0
        %1152 = vmatpush1.msra.mxu0 %v924
        %1153 = vmatprep.subr.mxu0 0.0
        %1154 = vmatpush1.msra.mxu0 %v925
        %1155 = vmatprep.subr.mxu0 0.0
        %1156 = vmatpush1.msra.mxu0 %v926
        %1157 = vmatprep.subr.mxu0 0.0
        %1158 = vmatpush1.msra.mxu0 %v927
        %1159 = vmatprep.subr.mxu0 0.0
        %1160 = vmatpush1.msra.mxu0 %v928
        %1161 = vmatprep.subr.mxu0 0.0
        %1162 = vmatpush1.msra.mxu0 %v929
        %1163 = vmatprep.subr.mxu0 0.0
        %1164 = vmatpush1.msra.mxu0 %v930
        %1165 = vmatprep.subr.mxu0 0.0
        %1166 = vmatpush1.msra.mxu0 %v931
        %1167 = vmatprep.subr.mxu0 0.0
        %1168 = vmatpush1.msra.mxu0 %v932
        %1169 = vmatprep.subr.mxu0 0.0
        %1170 = vmatpush1.msra.mxu0 %v933
        %1171 = vmatprep.subr.mxu0 0.0
        %1172 = vmatpush1.msra.mxu0 %v934
        %1173 = vmatprep.subr.mxu0 0.0
        %1174 = vmatpush1.msra.mxu0 %v935
        %1175 = vmatprep.subr.mxu0 0.0
        %1176 = vmatpush1.msra.mxu0 %v936
        %1177 = vmatprep.subr.mxu0 0.0
        %1178 = vmatpush1.msra.mxu0 %v937
        %1179 = vmatprep.subr.mxu0 0.0
        %1180 = vmatpush1.msra.mxu0 %v938
        %1181 = vmatprep.subr.mxu0 0.0
        %1182 = vmatpush1.msra.mxu0 %v939
        %1183 = vmatprep.subr.mxu0 0.0
        %1184 = vmatpush1.msra.mxu0 %v940
        %1185 = vmatprep.subr.mxu0 0.0
        %1186 = vmatpush1.msra.mxu0 %v941
        %1187 = vmatprep.subr.mxu0 0.0
        %1188 = vmatpush1.msra.mxu0 %v942
        %1189 = vmatprep.subr.mxu0 0.0
        %1190 = vmatpush1.msra.mxu0 %v943
        %1191 = vmatprep.subr.mxu0 0.0
        %1192 = vmatpush1.msra.mxu0 %v944
        %1193 = vmatprep.subr.mxu0 0.0
        %1194 = vmatpush1.msra.mxu0 %v945
        %1195 = vmatprep.subr.mxu0 0.0
        %1196 = vmatpush1.msra.mxu0 %v946
        %1197 = vmatprep.subr.mxu0 0.0
        %1198 = vmatpush1.msra.mxu0 %v947
        %1199 = vmatprep.subr.mxu0 0.0
        %1200 = vmatpush1.msra.mxu0 %v948
        %1201 = vmatprep.subr.mxu0 0.0
        %1202 = vmatpush1.msra.mxu0 %v949
        %1203 = vmatprep.subr.mxu0 0.0
        %1204 = vmatpush1.msra.mxu0 %v950
        %1205 = vmatprep.subr.mxu0 0.0
        %1206 = vmatpush1.msra.mxu0 %v951
        %1207 = vmatprep.subr.mxu0 0.0
        %1208 = vmatpush1.msra.mxu0 %v952
        %1209 = vmatprep.mubr.f32.mxu0 %v894
        %1210 = vmatmul.mubr.f32.gmra.mrb[0].mxu0 %v893
        %v1211 = vpop.f32.mrb[0].mxu0
        %v1212 = vadd.f32 0.0, %v1211
        %v1213 = vpop.f32.mrb[0].mxu0
        %1214 = vmatprep.mubr.f32.mxu0 %v908
        %1215 = vmatmul.mubr.f32.gmra.mrb[0].mxu0 %v907
        %v1216 = vpop.f32.mrb[0].mxu0
        %v1217 = vadd.f32 0.0, %v1216
        %v1218 = vpop.f32.mrb[0].mxu0
        %1219 = vdwg.mxu0
        %1220 = vmatprep.subr.mxu0 0.0
        %1221 = vmatpush1.msra.mxu0 %v953
        %1222 = vmatprep.subr.mxu0 0.0
        %1223 = vmatpush1.msra.mxu0 %v954
        %1224 = vmatprep.subr.mxu0 0.0
        %1225 = vmatpush1.msra.mxu0 %v955
        %1226 = vmatprep.subr.mxu0 0.0
        %1227 = vmatpush1.msra.mxu0 %v956
        %1228 = vmatprep.subr.mxu0 0.0
        %1229 = vmatpush1.msra.mxu0 %v957
        %1230 = vmatprep.subr.mxu0 0.0
        %1231 = vmatpush1.msra.mxu0 %v958
        %1232 = vmatprep.subr.mxu0 0.0
        %1233 = vmatpush1.msra.mxu0 %v959
        %1234 = vmatprep.subr.mxu0 0.0
        %1235 = vmatpush1.msra.mxu0 %v960
        %1236 = vmatprep.subr.mxu0 0.0
        %1237 = vmatpush1.msra.mxu0 %v961
        %1238 = vmatprep.subr.mxu0 0.0
        %1239 = vmatpush1.msra.mxu0 %v962
        %1240 = vmatprep.subr.mxu0 0.0
        %1241 = vmatpush1.msra.mxu0 %v963
        %1242 = vmatprep.subr.mxu0 0.0
        %1243 = vmatpush1.msra.mxu0 %v964
        %1244 = vmatprep.subr.mxu0 0.0
        %1245 = vmatpush1.msra.mxu0 %v965
        %1246 = vmatprep.subr.mxu0 0.0
        %1247 = vmatpush1.msra.mxu0 %v966
        %1248 = vmatprep.subr.mxu0 0.0
        %1249 = vmatpush1.msra.mxu0 %v967
        %1250 = vmatprep.subr.mxu0 0.0
        %1251 = vmatpush1.msra.mxu0 %v968
        %1252 = vmatprep.subr.mxu0 0.0
        %1253 = vmatpush1.msra.mxu0 %v969
        %1254 = vmatprep.subr.mxu0 0.0
        %1255 = vmatpush1.msra.mxu0 %v970
        %1256 = vmatprep.subr.mxu0 0.0
        %1257 = vmatpush1.msra.mxu0 %v971
        %1258 = vmatprep.subr.mxu0 0.0
        %1259 = vmatpush1.msra.mxu0 %v972
        %1260 = vmatprep.subr.mxu0 0.0
        %1261 = vmatpush1.msra.mxu0 %v973
        %1262 = vmatprep.subr.mxu0 0.0
        %1263 = vmatpush1.msra.mxu0 %v974
        %1264 = vmatprep.subr.mxu0 0.0
        %1265 = vmatpush1.msra.mxu0 %v975
        %1266 = vmatprep.subr.mxu0 0.0
        %1267 = vmatpush1.msra.mxu0 %v976
        %1268 = vmatprep.subr.mxu0 0.0
        %1269 = vmatpush1.msra.mxu0 %v977
        %1270 = vmatprep.subr.mxu0 0.0
        %1271 = vmatpush1.msra.mxu0 %v978
        %1272 = vmatprep.subr.mxu0 0.0
        %1273 = vmatpush1.msra.mxu0 %v979
        %1274 = vmatprep.subr.mxu0 0.0
        %1275 = vmatpush1.msra.mxu0 %v980
        %1276 = vmatprep.subr.mxu0 0.0
        %1277 = vmatpush1.msra.mxu0 %v981
        %1278 = vmatprep.subr.mxu0 0.0
        %1279 = vmatpush1.msra.mxu0 %v982
        %1280 = vmatprep.subr.mxu0 0.0
        %1281 = vmatpush1.msra.mxu0 %v983
        %1282 = vmatprep.subr.mxu0 0.0
        %1283 = vmatpush1.msra.mxu0 %v984
        %1284 = vmatprep.mubr.f32.mxu0 %v896
        %1285 = vmatmul.mubr.f32.gmra.mrb[0].mxu0 %v895
        %v1286 = vpop.f32.mrb[0].mxu0
        %v1287 = vadd.f32 %v1212, %v1286
        %v1288 = vpop.f32.mrb[0].mxu0
        %1289 = vmatprep.mubr.f32.mxu0 %v910
        %1290 = vmatmul.mubr.f32.gmra.mrb[0].mxu0 %v909
        %v1291 = vpop.f32.mrb[0].mxu0
        %v1292 = vadd.f32 %v1217, %v1291
        %v1293 = vpop.f32.mrb[0].mxu0
        %1294 = vdwg.mxu0
        %1295 = vmatprep.subr.mxu0 0.0
        %1296 = vmatpush1.msra.mxu0 %v985
        %1297 = vmatprep.subr.mxu0 0.0
        %1298 = vmatpush1.msra.mxu0 %v986
        %1299 = vmatprep.subr.mxu0 0.0
        %1300 = vmatpush1.msra.mxu0 %v987
        %1301 = vmatprep.subr.mxu0 0.0
        %1302 = vmatpush1.msra.mxu0 %v988
        %1303 = vmatprep.subr.mxu0 0.0
        %1304 = vmatpush1.msra.mxu0 %v989
        %1305 = vmatprep.subr.mxu0 0.0
        %1306 = vmatpush1.msra.mxu0 %v990
        %1307 = vmatprep.subr.mxu0 0.0
        %1308 = vmatpush1.msra.mxu0 %v991
        %1309 = vmatprep.subr.mxu0 0.0
        %1310 = vmatpush1.msra.mxu0 %v992
        %1311 = vmatprep.subr.mxu0 0.0
        %1312 = vmatpush1.msra.mxu0 %v993
        %1313 = vmatprep.subr.mxu0 0.0
        %1314 = vmatpush1.msra.mxu0 %v994
        %1315 = vmatprep.subr.mxu0 0.0
        %1316 = vmatpush1.msra.mxu0 %v995
        %1317 = vmatprep.subr.mxu0 0.0
        %1318 = vmatpush1.msra.mxu0 %v996
        %1319 = vmatprep.subr.mxu0 0.0
        %1320 = vmatpush1.msra.mxu0 %v997
        %1321 = vmatprep.subr.mxu0 0.0
        %1322 = vmatpush1.msra.mxu0 %v998
        %1323 = vmatprep.subr.mxu0 0.0
        %1324 = vmatpush1.msra.mxu0 %v999
        %1325 = vmatprep.subr.mxu0 0.0
        %1326 = vmatpush1.msra.mxu0 %v1000
        %1327 = vmatprep.subr.mxu0 0.0
        %1328 = vmatpush1.msra.mxu0 %v1001
        %1329 = vmatprep.subr.mxu0 0.0
        %1330 = vmatpush1.msra.mxu0 %v1002
        %1331 = vmatprep.subr.mxu0 0.0
        %1332 = vmatpush1.msra.mxu0 %v1003
        %1333 = vmatprep.subr.mxu0 0.0
        %1334 = vmatpush1.msra.mxu0 %v1004
        %1335 = vmatprep.subr.mxu0 0.0
        %1336 = vmatpush1.msra.mxu0 %v1005
        %1337 = vmatprep.subr.mxu0 0.0
        %1338 = vmatpush1.msra.mxu0 %v1006
        %1339 = vmatprep.subr.mxu0 0.0
        %1340 = vmatpush1.msra.mxu0 %v1007
        %1341 = vmatprep.subr.mxu0 0.0
        %1342 = vmatpush1.msra.mxu0 %v1008
        %1343 = vmatprep.subr.mxu0 0.0
        %1344 = vmatpush1.msra.mxu0 %v1009
        %1345 = vmatprep.subr.mxu0 0.0
        %1346 = vmatpush1.msra.mxu0 %v1010
        %1347 = vmatprep.subr.mxu0 0.0
        %1348 = vmatpush1.msra.mxu0 %v1011
        %1349 = vmatprep.subr.mxu0 0.0
        %1350 = vmatpush1.msra.mxu0 %v1012
        %1351 = vmatprep.subr.mxu0 0.0
        %1352 = vmatpush1.msra.mxu0 %v1013
        %1353 = vmatprep.subr.mxu0 0.0
        %1354 = vmatpush1.msra.mxu0 %v1014
        %1355 = vmatprep.subr.mxu0 0.0
        %1356 = vmatpush1.msra.mxu0 %v1015
        %1357 = vmatprep.subr.mxu0 0.0
        %1358 = vmatpush1.msra.mxu0 %v1016
        %1359 = vmatprep.mubr.f32.mxu0 %v898
        %1360 = vmatmul.mubr.f32.gmra.mrb[0].mxu0 %v897
        %v1361 = vpop.f32.mrb[0].mxu0
        %v1362 = vadd.f32 %v1287, %v1361
        %v1363 = vpop.f32.mrb[0].mxu0
        %1364 = vmatprep.mubr.f32.mxu0 %v912
        %1365 = vmatmul.mubr.f32.gmra.mrb[0].mxu0 %v911
        %v1366 = vpop.f32.mrb[0].mxu0
        %v1367 = vadd.f32 %v1292, %v1366
        %v1368 = vpop.f32.mrb[0].mxu0
        %1369 = vdwg.mxu0
        %1370 = vmatprep.subr.mxu0 0.0
        %1371 = vmatpush1.msra.mxu0 %v1017
        %1372 = vmatprep.subr.mxu0 0.0
        %1373 = vmatpush1.msra.mxu0 %v1018
        %1374 = vmatprep.subr.mxu0 0.0
        %1375 = vmatpush1.msra.mxu0 %v1019
        %1376 = vmatprep.subr.mxu0 0.0
        %1377 = vmatpush1.msra.mxu0 %v1020
        %1378 = vmatprep.subr.mxu0 0.0
        %1379 = vmatpush1.msra.mxu0 %v1021
        %1380 = vmatprep.subr.mxu0 0.0
        %1381 = vmatpush1.msra.mxu0 %v1022
        %1382 = vmatprep.subr.mxu0 0.0
        %1383 = vmatpush1.msra.mxu0 %v1023
        %1384 = vmatprep.subr.mxu0 0.0
        %1385 = vmatpush1.msra.mxu0 %v1024
        %1386 = vmatprep.subr.mxu0 0.0
        %1387 = vmatpush1.msra.mxu0 %v1025
        %1388 = vmatprep.subr.mxu0 0.0
        %1389 = vmatpush1.msra.mxu0 %v1026
        %1390 = vmatprep.subr.mxu0 0.0
        %1391 = vmatpush1.msra.mxu0 %v1027
        %1392 = vmatprep.subr.mxu0 0.0
        %1393 = vmatpush1.msra.mxu0 %v1028
        %1394 = vmatprep.subr.mxu0 0.0
        %1395 = vmatpush1.msra.mxu0 %v1029
        %1396 = vmatprep.subr.mxu0 0.0
        %1397 = vmatpush1.msra.mxu0 %v1030
        %1398 = vmatprep.subr.mxu0 0.0
        %1399 = vmatpush1.msra.mxu0 %v1031
        %1400 = vmatprep.subr.mxu0 0.0
        %1401 = vmatpush1.msra.mxu0 %v1032
        %1402 = vmatprep.subr.mxu0 0.0
        %1403 = vmatpush1.msra.mxu0 %v1033
        %1404 = vmatprep.subr.mxu0 0.0
        %1405 = vmatpush1.msra.mxu0 %v1034
        %1406 = vmatprep.subr.mxu0 0.0
        %1407 = vmatpush1.msra.mxu0 %v1035
        %1408 = vmatprep.subr.mxu0 0.0
        %1409 = vmatpush1.msra.mxu0 %v1036
        %1410 = vmatprep.subr.mxu0 0.0
        %1411 = vmatpush1.msra.mxu0 %v1037
        %1412 = vmatprep.subr.mxu0 0.0
        %1413 = vmatpush1.msra.mxu0 %v1038
        %1414 = vmatprep.subr.mxu0 0.0
        %1415 = vmatpush1.msra.mxu0 %v1039
        %1416 = vmatprep.subr.mxu0 0.0
        %1417 = vmatpush1.msra.mxu0 %v1040
        %1418 = vmatprep.subr.mxu0 0.0
        %1419 = vmatpush1.msra.mxu0 %v1041
        %1420 = vmatprep.subr.mxu0 0.0
        %1421 = vmatpush1.msra.mxu0 %v1042
        %1422 = vmatprep.subr.mxu0 0.0
        %1423 = vmatpush1.msra.mxu0 %v1043
        %1424 = vmatprep.subr.mxu0 0.0
        %1425 = vmatpush1.msra.mxu0 %v1044
        %1426 = vmatprep.subr.mxu0 0.0
        %1427 = vmatpush1.msra.mxu0 %v1045
        %1428 = vmatprep.subr.mxu0 0.0
        %1429 = vmatpush1.msra.mxu0 %v1046
        %1430 = vmatprep.subr.mxu0 0.0
        %1431 = vmatpush1.msra.mxu0 %v1047
        %1432 = vmatprep.subr.mxu0 0.0
        %1433 = vmatpush1.msra.mxu0 %v1048
        %1434 = vmatprep.mubr.f32.mxu0 %v900
        %1435 = vmatmul.mubr.f32.gmra.mrb[0].mxu0 %v899
        %v1436 = vpop.f32.mrb[0].mxu0
        %v1437 = vadd.f32 %v1362, %v1436
        %v1438 = vpop.f32.mrb[0].mxu0
        %1439 = vmatprep.mubr.f32.mxu0 %v914
        %1440 = vmatmul.mubr.f32.gmra.mrb[0].mxu0 %v913
        %v1441 = vpop.f32.mrb[0].mxu0
        %v1442 = vadd.f32 %v1367, %v1441
        %v1443 = vpop.f32.mrb[0].mxu0
        %1444 = vdwg.mxu0
        %1445 = vmatprep.subr.mxu0 0.0
        %1446 = vmatpush1.msra.mxu0 %v1049
        %1447 = vmatprep.subr.mxu0 0.0
        %1448 = vmatpush1.msra.mxu0 %v1050
        %1449 = vmatprep.subr.mxu0 0.0
        %1450 = vmatpush1.msra.mxu0 %v1051
        %1451 = vmatprep.subr.mxu0 0.0
        %1452 = vmatpush1.msra.mxu0 %v1052
        %1453 = vmatprep.subr.mxu0 0.0
        %1454 = vmatpush1.msra.mxu0 %v1053
        %1455 = vmatprep.subr.mxu0 0.0
        %1456 = vmatpush1.msra.mxu0 %v1054
        %1457 = vmatprep.subr.mxu0 0.0
        %1458 = vmatpush1.msra.mxu0 %v1055
        %1459 = vmatprep.subr.mxu0 0.0
        %1460 = vmatpush1.msra.mxu0 %v1056
        %1461 = vmatprep.subr.mxu0 0.0
        %1462 = vmatpush1.msra.mxu0 %v1057
        %1463 = vmatprep.subr.mxu0 0.0
        %1464 = vmatpush1.msra.mxu0 %v1058
        %1465 = vmatprep.subr.mxu0 0.0
        %1466 = vmatpush1.msra.mxu0 %v1059
        %1467 = vmatprep.subr.mxu0 0.0
        %1468 = vmatpush1.msra.mxu0 %v1060
        %1469 = vmatprep.subr.mxu0 0.0
        %1470 = vmatpush1.msra.mxu0 %v1061
        %1471 = vmatprep.subr.mxu0 0.0
        %1472 = vmatpush1.msra.mxu0 %v1062
        %1473 = vmatprep.subr.mxu0 0.0
        %1474 = vmatpush1.msra.mxu0 %v1063
        %1475 = vmatprep.subr.mxu0 0.0
        %1476 = vmatpush1.msra.mxu0 %v1064
        %1477 = vmatprep.subr.mxu0 0.0
        %1478 = vmatpush1.msra.mxu0 %v1065
        %1479 = vmatprep.subr.mxu0 0.0
        %1480 = vmatpush1.msra.mxu0 %v1066
        %1481 = vmatprep.subr.mxu0 0.0
        %1482 = vmatpush1.msra.mxu0 %v1067
        %1483 = vmatprep.subr.mxu0 0.0
        %1484 = vmatpush1.msra.mxu0 %v1068
        %1485 = vmatprep.subr.mxu0 0.0
        %1486 = vmatpush1.msra.mxu0 %v1069
        %1487 = vmatprep.subr.mxu0 0.0
        %1488 = vmatpush1.msra.mxu0 %v1070
        %1489 = vmatprep.subr.mxu0 0.0
        %1490 = vmatpush1.msra.mxu0 %v1071
        %1491 = vmatprep.subr.mxu0 0.0
        %1492 = vmatpush1.msra.mxu0 %v1072
        %1493 = vmatprep.subr.mxu0 0.0
        %1494 = vmatpush1.msra.mxu0 %v1073
        %1495 = vmatprep.subr.mxu0 0.0
        %1496 = vmatpush1.msra.mxu0 %v1074
        %1497 = vmatprep.subr.mxu0 0.0
        %1498 = vmatpush1.msra.mxu0 %v1075
        %1499 = vmatprep.subr.mxu0 0.0
        %1500 = vmatpush1.msra.mxu0 %v1076
        %1501 = vmatprep.subr.mxu0 0.0
        %1502 = vmatpush1.msra.mxu0 %v1077
        %1503 = vmatprep.subr.mxu0 0.0
        %1504 = vmatpush1.msra.mxu0 %v1078
        %1505 = vmatprep.subr.mxu0 0.0
        %1506 = vmatpush1.msra.mxu0 %v1079
        %1507 = vmatprep.subr.mxu0 0.0
        %1508 = vmatpush1.msra.mxu0 %v1080
        %1509 = vmatprep.mubr.f32.mxu0 %v902
        %1510 = vmatmul.mubr.f32.gmra.mrb[0].mxu0 %v901
        %v1511 = vpop.f32.mrb[0].mxu0
        %v1512 = vadd.f32 %v1437, %v1511
        %v1513 = vpop.f32.mrb[0].mxu0
        %1514 = vmatprep.mubr.f32.mxu0 %v916
        %1515 = vmatmul.mubr.f32.gmra.mrb[0].mxu0 %v915
        %v1516 = vpop.f32.mrb[0].mxu0
        %v1517 = vadd.f32 %v1442, %v1516
        %v1518 = vpop.f32.mrb[0].mxu0
        %1519 = vdwg.mxu0
        %1520 = vmatprep.subr.mxu0 0.0
        %1521 = vmatpush1.msra.mxu0 %v1081
        %1522 = vmatprep.subr.mxu0 0.0
        %1523 = vmatpush1.msra.mxu0 %v1082
        %1524 = vmatprep.subr.mxu0 0.0
        %1525 = vmatpush1.msra.mxu0 %v1083
        %1526 = vmatprep.subr.mxu0 0.0
        %1527 = vmatpush1.msra.mxu0 %v1084
        %1528 = vmatprep.subr.mxu0 0.0
        %1529 = vmatpush1.msra.mxu0 %v1085
        %1530 = vmatprep.subr.mxu0 0.0
        %1531 = vmatpush1.msra.mxu0 %v1086
        %1532 = vmatprep.subr.mxu0 0.0
        %1533 = vmatpush1.msra.mxu0 %v1087
        %1534 = vmatprep.subr.mxu0 0.0
        %1535 = vmatpush1.msra.mxu0 %v1088
        %1536 = vmatprep.subr.mxu0 0.0
        %1537 = vmatpush1.msra.mxu0 %v1089
        %1538 = vmatprep.subr.mxu0 0.0
        %1539 = vmatpush1.msra.mxu0 %v1090
        %1540 = vmatprep.subr.mxu0 0.0
        %1541 = vmatpush1.msra.mxu0 %v1091
        %1542 = vmatprep.subr.mxu0 0.0
        %1543 = vmatpush1.msra.mxu0 %v1092
        %1544 = vmatprep.subr.mxu0 0.0
        %1545 = vmatpush1.msra.mxu0 %v1093
        %1546 = vmatprep.subr.mxu0 0.0
        %1547 = vmatpush1.msra.mxu0 %v1094
        %1548 = vmatprep.subr.mxu0 0.0
        %1549 = vmatpush1.msra.mxu0 %v1095
        %1550 = vmatprep.subr.mxu0 0.0
        %1551 = vmatpush1.msra.mxu0 %v1096
        %1552 = vmatprep.subr.mxu0 0.0
        %1553 = vmatpush1.msra.mxu0 %v1097
        %1554 = vmatprep.subr.mxu0 0.0
        %1555 = vmatpush1.msra.mxu0 %v1098
        %1556 = vmatprep.subr.mxu0 0.0
        %1557 = vmatpush1.msra.mxu0 %v1099
        %1558 = vmatprep.subr.mxu0 0.0
        %1559 = vmatpush1.msra.mxu0 %v1100
        %1560 = vmatprep.subr.mxu0 0.0
        %1561 = vmatpush1.msra.mxu0 %v1101
        %1562 = vmatprep.subr.mxu0 0.0
        %1563 = vmatpush1.msra.mxu0 %v1102
        %1564 = vmatprep.subr.mxu0 0.0
        %1565 = vmatpush1.msra.mxu0 %v1103
        %1566 = vmatprep.subr.mxu0 0.0
        %1567 = vmatpush1.msra.mxu0 %v1104
        %1568 = vmatprep.subr.mxu0 0.0
        %1569 = vmatpush1.msra.mxu0 %v1105
        %1570 = vmatprep.subr.mxu0 0.0
        %1571 = vmatpush1.msra.mxu0 %v1106
        %1572 = vmatprep.subr.mxu0 0.0
        %1573 = vmatpush1.msra.mxu0 %v1107
        %1574 = vmatprep.subr.mxu0 0.0
        %1575 = vmatpush1.msra.mxu0 %v1108
        %1576 = vmatprep.subr.mxu0 0.0
        %1577 = vmatpush1.msra.mxu0 %v1109
        %1578 = vmatprep.subr.mxu0 0.0
        %1579 = vmatpush1.msra.mxu0 %v1110
        %1580 = vmatprep.subr.mxu0 0.0
        %1581 = vmatpush1.msra.mxu0 %v1111
        %1582 = vmatprep.subr.mxu0 0.0
        %1583 = vmatpush1.msra.mxu0 %v1112
        %1584 = vmatprep.mubr.f32.mxu0 %v904
        %1585 = vmatmul.mubr.f32.gmra.mrb[0].mxu0 %v903
        %v1586 = vpop.f32.mrb[0].mxu0
        %v1587 = vadd.f32 %v1512, %v1586
        %v1588 = vpop.f32.mrb[0].mxu0
        %1589 = vmatprep.mubr.f32.mxu0 %v918
        %1590 = vmatmul.mubr.f32.gmra.mrb[0].mxu0 %v917
        %v1591 = vpop.f32.mrb[0].mxu0
        %v1592 = vadd.f32 %v1517, %v1591
        %v1593 = vpop.f32.mrb[0].mxu0
        %1594 = vdwg.mxu0
        %1595 = vmatprep.subr.mxu0 0.0
        %1596 = vmatpush1.msra.mxu0 %v1113
        %1597 = vmatprep.subr.mxu0 0.0
        %1598 = vmatpush1.msra.mxu0 %v1114
        %1599 = vmatprep.subr.mxu0 0.0
        %1600 = vmatpush1.msra.mxu0 %v1115
        %1601 = vmatprep.subr.mxu0 0.0
        %1602 = vmatpush1.msra.mxu0 %v1116
        %1603 = vmatprep.subr.mxu0 0.0
        %1604 = vmatpush1.msra.mxu0 %v1117
        %1605 = vmatprep.subr.mxu0 0.0
        %1606 = vmatpush1.msra.mxu0 %v1118
        %1607 = vmatprep.subr.mxu0 0.0
        %1608 = vmatpush1.msra.mxu0 %v1119
        %1609 = vmatprep.subr.mxu0 0.0
        %1610 = vmatpush1.msra.mxu0 %v1120
        %1611 = vmatprep.subr.mxu0 0.0
        %1612 = vmatpush1.msra.mxu0 %v1121
        %1613 = vmatprep.subr.mxu0 0.0
        %1614 = vmatpush1.msra.mxu0 %v1122
        %1615 = vmatprep.subr.mxu0 0.0
        %1616 = vmatpush1.msra.mxu0 %v1123
        %1617 = vmatprep.subr.mxu0 0.0
        %1618 = vmatpush1.msra.mxu0 %v1124
        %1619 = vmatprep.subr.mxu0 0.0
        %1620 = vmatpush1.msra.mxu0 %v1125
        %1621 = vmatprep.subr.mxu0 0.0
        %1622 = vmatpush1.msra.mxu0 %v1126
        %1623 = vmatprep.subr.mxu0 0.0
        %1624 = vmatpush1.msra.mxu0 %v1127
        %1625 = vmatprep.subr.mxu0 0.0
        %1626 = vmatpush1.msra.mxu0 %v1128
        %1627 = vmatprep.subr.mxu0 0.0
        %1628 = vmatpush1.msra.mxu0 %v1129
        %1629 = vmatprep.subr.mxu0 0.0
        %1630 = vmatpush1.msra.mxu0 %v1130
        %1631 = vmatprep.subr.mxu0 0.0
        %1632 = vmatpush1.msra.mxu0 %v1131
        %1633 = vmatprep.subr.mxu0 0.0
        %1634 = vmatpush1.msra.mxu0 %v1132
        %1635 = vmatprep.subr.mxu0 0.0
        %1636 = vmatpush1.msra.mxu0 %v1133
        %1637 = vmatprep.subr.mxu0 0.0
        %1638 = vmatpush1.msra.mxu0 %v1134
        %1639 = vmatprep.subr.mxu0 0.0
        %1640 = vmatpush1.msra.mxu0 %v1135
        %1641 = vmatprep.subr.mxu0 0.0
        %1642 = vmatpush1.msra.mxu0 %v1136
        %1643 = vmatprep.subr.mxu0 0.0
        %1644 = vmatpush1.msra.mxu0 %v1137
        %1645 = vmatprep.subr.mxu0 0.0
        %1646 = vmatpush1.msra.mxu0 %v1138
        %1647 = vmatprep.subr.mxu0 0.0
        %1648 = vmatpush1.msra.mxu0 %v1139
        %1649 = vmatprep.subr.mxu0 0.0
        %1650 = vmatpush1.msra.mxu0 %v1140
        %1651 = vmatprep.subr.mxu0 0.0
        %1652 = vmatpush1.msra.mxu0 %v1141
        %1653 = vmatprep.subr.mxu0 0.0
        %1654 = vmatpush1.msra.mxu0 %v1142
        %1655 = vmatprep.subr.mxu0 0.0
        %1656 = vmatpush1.msra.mxu0 %v1143
        %1657 = vmatprep.subr.mxu0 0.0
        %1658 = vmatpush1.msra.mxu0 %v1144
        %1659 = vmatprep.mubr.f32.mxu0 %v906
        %1660 = vmatmul.mubr.f32.gmra.mrb[0].mxu0 %v905
        %v1661 = vpop.f32.mrb[0].mxu0
        %v1662 = vadd.f32 %v1587, %v1661
        %v1663 = vpop.f32.mrb[0].mxu0
        %1664 = vmatprep.mubr.f32.mxu0 %v920
        %1665 = vmatmul.mubr.f32.gmra.mrb[0].mxu0 %v919
        %v1666 = vpop.f32.mrb[0].mxu0
        %v1667 = vadd.f32 %v1592, %v1666
        %v1668 = vpop.f32.mrb[0].mxu0
        %1669 = vdwg.mxu0
        %v1670 = vxor.u32 %v1662, 2147483648
        %v1671 = vxor.u32 %v1667, 2147483648
        %v1672 = vmul.f32 %v1670, 1.442695
        %v1673 = vpow.pop %v1672
        %v1674 = vmul.f32 %v1671, 1.442695
        %v1675 = vpow.pop %v1674
        %v1676 = vadd.f32 %v1673, 1.0
        %v1677 = vadd.f32 %v1675, 1.0
        %v1678 = vrcp.pop %v1676
        %v1679 = vmul.f32 1.0, %v1678
        %v1680 = vrcp.pop %v1677
        %v1681 = vmul.f32 1.0, %v1680
        %1682 = vst.msk [vmem:[%s136] sm:$0xff] %vm174, %v1679
        %1683 = vst.msk [vmem:[%s136 + $0x8] sm:$0xff] %vm174, %v1681
        %s1684 = sand.u32 %s71, 1
        %s1685 = scalar_lea.sflag [#allocation5], %s1684
        %s1686 = sand.u32 %s71, 1
        %s1687 = smul.addr %s1686, 16
        %s1688 = scalar_lea.vmem [#allocation4], %s1687
        // Predicated region
        $region29: #{spatial_attention.1} parent=27 // pred_check
          %p1689 = pneg %p81
        $region30: #{spatial_attention.1} parent=27 // pred_check_branch
          %1691 = sbr.rel (%p1689) target = $region32
        $region31: #{spatial_attention.1} parent=27 // pred_region
          %s1693 = ssub.s32 256, 256
          %1694 = vsyncadd %s1685, %s1693
          %s1695 = smul.addr %s16, 2
          %s1696 = smul.addr %s1695, 128
          %s1697 = scalar_lea.hbm %s2, %s1696
          %s1698 = sshll.u32 %s1688, 4
          %s1699 = int_to_ptr.vmem [resolvable:$true] %s1698
          %1704 = dma.vmem_to_hbm [thread:$0]  %s1699, 256, %s1697, %s1685, 128, 128, 8
        $region32: #{spatial_attention.1} parent=27 // pred_fallthru
          _
      $region28: #{spatial_attention.1} parent=5 // pred_fallthru
        _
      %p1705 = scmp.le.s32.totalorder 2, %s11
      // Predicated region
      $region33: #{spatial_attention.1} parent=5 // pred_check
        %p1706 = pneg %p1705
      $region34: #{spatial_attention.1} parent=5 // pred_check_branch
        %1708 = sbr.rel (%p1706) target = $region36
      $region35: #{spatial_attention.1} parent=5 // pred_region
        %s1709 = ssub.s32 %s11, 2
        // Predicated region
        $region37: #{spatial_attention.1} parent=35 // pred_check
          %p1710 = pneg %p87
        $region38: #{spatial_attention.1} parent=35 // pred_check_branch
          %1712 = sbr.rel (%p1710) target = $region40
        $region39: #{spatial_attention.1} parent=35 // pred_region
          %s1713 = sand.u32 %s72, 1
          %s1714 = scalar_lea.sflag [#allocation5], %s1713
          %s1715 = sand.u32 %s72, 1
          %s1716 = smul.addr %s1715, 16
          %s1717 = scalar_lea.vmem [#allocation4], %s1716
          %1718 = dma.done %s1714, 256
        $region40: #{spatial_attention.1} parent=35 // pred_fallthru
          _
      $region36: #{spatial_attention.1} parent=5 // pred_fallthru
        _
    $region6: #{spatial_attention.1} parent=1 // loop_footer
      %s15 = sadd.s32 1, %s11
    $region7: #{spatial_attention.1} parent=1 // loop_footer_branch
      %10 = sbr.rel target = $region3
    $region8: #{spatial_attention.1} parent=1 // loop_exit
      _
    %1719 = vsyncpa [#allocation5], 1
    %s1720 = scalar_lea.sflag [#allocation5], 1
    %1721 = vsyncpa %s1720, 1

</llo_original>
